<compile_context>
chip_gen: v7x
topology: tpu7x:2x2x1
jax: 0.10.0
libtpu: 0.0.40
codegen_flags: <defaults>
</compile_context>

<pallas_src>
import functools

import jax
import jax.numpy as jnp
from jax import lax
from jax.experimental import pallas as pl
from jax.experimental.pallas import tpu as pltpu

PAD = 5  # largest dilation -> vertical halo rows needed by the dilated convs


def _halo(w_img):
    """Vertical halo rows: PAD rows for the largest dilation plus enough extra
    rows that every (row, col)-shifted tap is an in-bounds lane slice of the
    flattened halo band (column shifts of up to +-PAD lanes are absorbed by
    the extra rows instead of wrapping)."""
    return PAD + -(-PAD // w_img)


def _row_groups():
    """The 25 taps grouped by row offset (7 distinct row offsets).  The three
    dilated-conv centres coincide with the identity tap and are merged."""
    groups = []
    for dr in (-5, -3, -1, 0, 1, 3, 5):
        cols = (-5, -3, -1, 0, 1, 3, 5) if dr == 0 else (-abs(dr), 0, abs(dr))
        groups.append((dr, cols))
    return tuple(groups)


def _tap_list(groups):
    return tuple((dr, dc) for dr, cols in groups for dc in cols)


def _mcm_kernel(xpad_ref, wk_ref, out_ref, taps_ref, *, h_tile, w_img, halo,
                groups):
    """One (batch, row-tile) grid step.

    xpad_ref : (1, C, Hp, W)      H-padded image of this batch element (VMEM)
    wk_ref   : (C, K)             folded weights, K = 25 * C
    out_ref  : (1, C, h_tile*W)   lane-dense output slab (spatial on lanes)
    taps_ref : (2, K, h_tile*W)   double-buffered im2col scratch
    """
    C = out_ref.shape[1]
    lanes = h_tile * w_img
    h = pl.program_id(1)
    row0 = pl.multiple_of(h * h_tile, h_tile)      # top padded row of the band
    slot = (pl.program_id(0) * pl.num_programs(1) + h) % 2

    # ONE lane-dense relayout per grid step: the whole halo band, flattened so
    # the spatial dim sits on lanes.  Every shifted tap below is a *static*
    # lane-offset slice of this value + a VPU select -- no further relayouts,
    # no per-tap 16-wide window reshapes.
    h_band = h_tile + 2 * halo
    band = xpad_ref[0, :, pl.ds(row0, h_band), :].reshape(C, h_band * w_img)

    # Output-column index of every lane, for the horizontal boundary masks
    # (x is NOT padded along W; out-of-image columns must read as zero).
    col = lax.broadcasted_iota(jnp.int32, (1, lanes), 1) % w_img

    t = 0
    for dr, cols in groups:
        for dc in cols:
            start = (halo + dr) * w_img + dc       # static; in-bounds by halo
            tap = band[:, start:start + lanes]
            if dc > 0:
                tap = jnp.where(col < w_img - dc, tap, 0)
            elif dc < 0:
                tap = jnp.where(col >= -dc, tap, 0)
            taps_ref[slot, pl.ds(t * C, C), :] = tap
            t += 1

    # Single big-K MXU matmul; the residual add, the x-branch of the 1x1 mix
    # and all three dilated convs are folded into wk.  (For small C the matmul
    # M dim underutilizes the MXU and the kernel is gather-bound, which is why
    # the gather path above is the cheap one; for large C the small folded
    # weight should be the MXU-stationary operand.)
    out_ref[0] = jnp.dot(
        wk_ref[...], taps_ref[slot],
        preferred_element_type=jnp.float32).astype(out_ref.dtype)


def _fold_weights(w1, w3, w5, wmix, C, taps):
    """Fold the 1x1 mix + residual into per-tap (C_in, C_out) blocks, merged by
    spatial offset, packed as wk[co, t*C + ci] = block_t[ci, co]."""
    f32 = jnp.float32
    blocks = {off: jnp.zeros((C, C), f32) for off in taps}
    # Residual + x-branch of the 1x1 conv.
    blocks[(0, 0)] = blocks[(0, 0)] + jnp.eye(C, dtype=f32) + wmix[0].astype(f32)
    # Dilated 3x3 branches, each folded through its slice of the 1x1 weight.
    for w, mix, d in ((w1, wmix[1], 1), (w3, wmix[2], 3), (w5, wmix[3], 5)):
        w = w.astype(f32)
        mix = mix.astype(f32)
        for kh in range(3):
            for kw in range(3):
                off = ((kh - 1) * d, (kw - 1) * d)
                blocks[off] = blocks[off] + jnp.dot(w[kh, kw], mix)
    stacked = jnp.stack([blocks[off] for off in taps], axis=0)    # (T, Ci, Co)
    return jnp.transpose(stacked, (2, 0, 1)).reshape(C, len(taps) * C)


def _working_set_bytes(C, Hp, W, K, h_tile, itemsize):
    """Per-core VMEM working set: double-buffered padded-image / output /
    weight blocks plus the double-buffered im2col scratch."""
    lanes = h_tile * W
    resident_img = C * Hp * W * itemsize
    out_blk = C * lanes * itemsize
    wk_blk = C * K * itemsize
    taps = 2 * K * lanes * itemsize
    return 2 * resident_img + 2 * out_blk + 2 * wk_blk + taps


def _vmem_capacity_bytes():
    try:
        return int(pltpu.get_tpu_info().vmem_capacity_bytes)
    except Exception:
        return 64 << 20            # conservative fallback (v7x per-core VMEM)


def _vmem_budget_bytes():
    # Headroom: ~48 MiB on v7x (64 MiB physical), <= ~100 MiB on v5e/v6e.
    return min(_vmem_capacity_bytes() * 3 // 4, 100 << 20)


def _num_tensorcores():
    try:
        return max(1, int(getattr(jax.devices()[0], "num_cores", 1)))
    except Exception:
        return 1


def _choose_h_tile(H, W, C, n_taps, itemsize, batch):
    """Largest legal row-tile height that fits the VMEM budget.

    Legal: h_tile divides H and the output slab (h_tile*W lanes) is a multiple
    of 128 lanes (unmasked lane-dense stores) or the full image.  Dtype- and
    budget-aware.  The forced 2-way split is only applied when a single batch
    element must feed two TensorCores (B == 1 on a multi-core chip); on 1-TC
    v5e/v6e it would only halve the matmul N and add a grid step."""
    Hp = H + 2 * _halo(W)
    K = n_taps * C
    budget = _vmem_budget_bytes()

    def legal(ht):
        return H % ht == 0 and ((ht * W) % 128 == 0 or ht == H)

    def fits(ht):
        return _working_set_bytes(C, Hp, W, K, ht, itemsize) <= budget

    candidates = [d for d in range(H, 0, -1) if legal(d)]
    h_tile = next((d for d in candidates if fits(d)), candidates[-1])

    if (batch == 1 and _num_tensorcores() >= 2 and H // h_tile == 1
            and h_tile % 2 == 0 and legal(h_tile // 2)):
        h_tile //= 2
    return h_tile


@jax.jit
def multi_scale_conv(x, w1, w3, w5, wmix):
    """x: (B, C, H, W); w{1,3,5}: HWIO (3, 3, C, C); wmix: (4, C_in, C_out)
    grouped by the concat order [x, d1, d3, d5].  Returns (B, C, H, W)."""
    B, C, H, W = x.shape
    halo = _halo(W)
    Hp = H + 2 * halo

    groups = _row_groups()
    taps = _tap_list(groups)
    K = len(taps) * C
    # bf16 inputs stay bf16 into the MXU (f32 accumulation via
    # preferred_element_type); f32 stays f32.
    wk = _fold_weights(w1, w3, w5, wmix, C, taps).astype(x.dtype)

    itemsize = jnp.dtype(x.dtype).itemsize
    h_tile = _choose_h_tile(H, W, C, len(taps), itemsize, B)
    n_h = H // h_tile
    lanes = h_tile * W

    # Vertical halo only; the horizontal halo is handled in-kernel by lane
    # shifts + boundary masks, so no W padding (no extra HBM pass for it).
    xpad = jnp.pad(x, ((0, 0), (0, 0), (halo, halo), (0, 0)))

    # TODO(synk): for very large images on v7x (64 MiB VMEM) stream overlapping
    # halo row-bands (manual DMA / pl.Element windows) instead of keeping the
    # whole padded image VMEM-resident per batch element.
    need = _working_set_bytes(C, Hp, W, K, h_tile, itemsize)
    cap = _vmem_capacity_bytes()
    vmem_limit = int(min(max(int(need * 1.3) + (4 << 20), 32 << 20),
                         cap - (2 << 20)))

    # B >= 2: shard the batch axis across TensorCores so each core keeps one
    # resident image (row tiles stay sequential).  B == 1: shard the row tiles.
    dims = ("parallel", "arbitrary") if B > 1 else ("arbitrary", "parallel")

    kernel = functools.partial(_mcm_kernel, h_tile=h_tile, w_img=W, halo=halo,
                               groups=groups)
    out_flat = pl.pallas_call(
        kernel,
        out_shape=jax.ShapeDtypeStruct((B, C, H * W), x.dtype),
        grid=(B, n_h),
        in_specs=[
            # Whole H-padded image per batch element; the index map is constant
            # in h, so it is DMA'd once per batch element and reused across its
            # row tiles.
            pl.BlockSpec((1, C, Hp, W), lambda b, h: (b, 0, 0, 0)),
            pl.BlockSpec((C, K), lambda b, h: (0, 0)),
        ],
        # Lane-dense output slab: flattened spatial (h_tile*W lanes) minor,
        # channels on sublanes; the wrapper reshapes back to (B, C, H, W).
        out_specs=pl.BlockSpec((1, C, lanes), lambda b, h: (b, 0, h)),
        scratch_shapes=[pltpu.VMEM((2, K, lanes), x.dtype)],
        compiler_params=pltpu.CompilerParams(
            dimension_semantics=dims, vmem_limit_bytes=vmem_limit),
    )(xpad, wk)
    return out_flat.reshape(B, C, H, W)


def _reference_forward(x, w1, w3, w5, wmix):
    """Pure-JAX reference (NCHW), mirrors the PyTorch module exactly."""
    def dconv(x, w, d):
        return lax.conv_general_dilated(
            x, w, window_strides=(1, 1), padding=[(d, d), (d, d)],
            rhs_dilation=(d, d), dimension_numbers=("NCHW", "HWIO", "NCHW"))

    d1, d3, d5 = dconv(x, w1, 1), dconv(x, w3, 3), dconv(x, w5, 5)
    mix = sum(jnp.einsum("bihw,io->bohw", br, wmix[i])
              for i, br in enumerate((x, d1, d3, d5)))
    return x + mix


if __name__ == "__main__":
    B, C, H, W = 2, 8, 16, 16  # dim = 8

    key = jax.random.PRNGKey(0)
    kx, k1, k3, k5, km = jax.random.split(key, 5)

    x = jax.random.normal(kx, (B, C, H, W), dtype=jnp.float32)
    # Deterministic synthetic weights (bias=False in the module).
    w1 = 0.1 * jax.random.normal(k1, (3, 3, C, C), dtype=jnp.float32)
    w3 = 0.1 * jax.random.normal(k3, (3, 3, C, C), dtype=jnp.float32)
    w5 = 0.1 * jax.random.normal(k5, (3, 3, C, C), dtype=jnp.float32)
    wmix = 0.1 * jax.random.normal(km, (4, C, C), dtype=jnp.float32)

    out = jax.block_until_ready(multi_scale_conv(x, w1, w3, w5, wmix))

    ref = _reference_forward(x, w1, w3, w5, wmix)
    assert out.shape == (B, C, H, W)
    assert jnp.allclose(out, ref, atol=1e-4, rtol=1e-4), "mismatch vs reference"

    print("KERNEL_OK")
</pallas_src>

<mosaic_0001>
module attributes {stable_mosaic.version = 11 : i64} {
  func.func @_mcm_kernel(%arg0: i32, %arg1: i32, %arg2: memref<1x8x28x16xf32, #tpu.memory_space<vmem>>, %arg3: memref<8x200xf32, #tpu.memory_space<vmem>>, %arg4: memref<1x8x256xf32, #tpu.memory_space<vmem>>, %arg5: memref<2x200x256xf32, #tpu.memory_space<vmem>>) attributes {dimension_semantics = [#tpu.dimension_semantics<parallel>, #tpu.dimension_semantics<arbitrary>], iteration_bounds = array<i64: 2, 1>, scalar_prefetch = 0 : i64, scratch_operands = 1 : i64, tpu.core_type = #tpu.core_type<tc>, window_params = [{transform_indices = @transform_0, window_bounds = array<i64: 1, 8, 28, 16>}, {pipeline_mode = #tpu.pipeline_mode<synchronous>, transform_indices = @transform_1, window_bounds = array<i64: 8, 200>}, {transform_indices = @transform_2, window_bounds = array<i64: 1, 8, 256>}]} {
    %c16_i32 = arith.constant 16 : i32
    %0 = arith.muli %arg1, %c16_i32 : i32
    %1 = tpu.assume_multiple %0, 16 : i32
    %c1_i32 = arith.constant 1 : i32
    %2 = arith.muli %arg0, %c1_i32 : i32
    %3 = arith.addi %2, %arg1 : i32
    %c2_i32 = arith.constant 2 : i32
    %c0_i32 = arith.constant 0 : i32
    %4 = arith.cmpi eq, %c2_i32, %c0_i32 : i32
    %c1_i32_0 = arith.constant 1 : i32
    %5 = arith.select %4, %c1_i32_0, %c2_i32 : i32
    %6 = arith.remsi %3, %5 : i32
    %c0_i32_1 = arith.constant 0 : i32
    %7 = arith.cmpi ne, %6, %c0_i32_1 : i32
    %c0_i32_2 = arith.constant 0 : i32
    %8 = arith.cmpi slt, %6, %c0_i32_2 : i32
    %c0_i32_3 = arith.constant 0 : i32
    %9 = arith.cmpi slt, %5, %c0_i32_3 : i32
    %10 = arith.xori %8, %9 : i1
    %11 = arith.andi %10, %7 : i1
    %12 = arith.addi %6, %5 : i32
    %13 = arith.select %11, %12, %6 : i32
    %c0 = arith.constant 0 : index
    %c0_4 = arith.constant 0 : index
    %14 = arith.index_cast %1 : i32 to index
    %c0_5 = arith.constant 0 : index
    %15 = vector.load %arg2[%c0, %c0_4, %14, %c0_5] : memref<1x8x28x16xf32, #tpu.memory_space<vmem>>, vector<1x8x28x16xf32>
    %16 = vector.shape_cast %15 : vector<1x8x28x16xf32> to vector<8x28x16xf32>
    %17 = vector.shape_cast %16 : vector<8x28x16xf32> to vector<8x448xf32>
    %18 = tpu.iota {dimensions = array<i32: 1>} : vector<1x256xi32>
    %c16_i32_6 = arith.constant 16 : i32
    %c0_i32_7 = arith.constant 0 : i32
    %19 = arith.cmpi eq, %c16_i32_6, %c0_i32_7 : i32
    %c1_i32_8 = arith.constant 1 : i32
    %20 = arith.select %19, %c1_i32_8, %c16_i32_6 : i32
    %21 = vector.broadcast %20 : i32 to vector<1x256xi32>
    %22 = arith.remsi %18, %21 : vector<1x256xi32>
    %c0_i32_9 = arith.constant 0 : i32
    %23 = vector.broadcast %c0_i32_9 : i32 to vector<1x256xi32>
    %24 = arith.cmpi ne, %22, %23 : vector<1x256xi32>
    %c0_i32_10 = arith.constant 0 : i32
    %25 = vector.broadcast %c0_i32_10 : i32 to vector<1x256xi32>
    %26 = arith.cmpi slt, %22, %25 : vector<1x256xi32>
    %c0_i32_11 = arith.constant 0 : i32
    %27 = arith.cmpi slt, %20, %c0_i32_11 : i32
    %28 = vector.broadcast %27 : i1 to vector<1x256xi1>
    %29 = vector.broadcast %28 : vector<1x256xi1> to vector<1x256xi1>
    %30 = arith.xori %26, %29 : vector<1x256xi1>
    %31 = arith.andi %30, %24 : vector<1x256xi1>
    %32 = vector.broadcast %20 : i32 to vector<1x256xi32>
    %33 = arith.addi %22, %32 : vector<1x256xi32>
    %34 = arith.select %31, %33, %22 : vector<1x256xi1>, vector<1x256xi32>
    %35 = vector.extract_strided_slice %17 {offsets = [0, 11], sizes = [8, 256], strides = [1, 1]} : vector<8x448xf32> to vector<8x256xf32>
    %c5_i32 = arith.constant 5 : i32
    %36 = vector.broadcast %c5_i32 : i32 to vector<1x256xi32>
    %37 = arith.cmpi sge, %34, %36 : vector<1x256xi32>
    %c0_i32_12 = arith.constant 0 : i32
    %38 = arith.sitofp %c0_i32_12 : i32 to f32
    %39 = vector.shape_cast %37 : vector<1x256xi1> to vector<1x256xi1>
    %40 = vector.broadcast %39 : vector<1x256xi1> to vector<8x256xi1>
    %41 = vector.broadcast %38 : f32 to vector<8x256xf32>
    %42 = arith.select %40, %35, %41 : vector<8x256xi1>, vector<8x256xf32>
    %43 = arith.index_cast %13 : i32 to index
    %c0_13 = arith.constant 0 : index
    %c0_14 = arith.constant 0 : index
    %44 = vector.load %arg5[%43, %c0_13, %c0_14] : memref<2x200x256xf32, #tpu.memory_space<vmem>>, vector<1x8x256xf32>
    %45 = vector.shape_cast %44 : vector<1x8x256xf32> to vector<8x256xf32>
    %46 = vector.shape_cast %42 : vector<8x256xf32> to vector<1x8x256xf32>
    tpu.vector_store %arg5[%43, %c0_13, %c0_14], %46 {strides = array<i32>} : memref<2x200x256xf32, #tpu.memory_space<vmem>>, vector<1x8x256xf32>,
    %47 = vector.extract_strided_slice %17 {offsets = [0, 16], sizes = [8, 256], strides = [1, 1]} : vector<8x448xf32> to vector<8x256xf32>
    %48 = arith.index_cast %13 : i32 to index
    %c8 = arith.constant 8 : index
    %c0_15 = arith.constant 0 : index
    %49 = vector.load %arg5[%48, %c8, %c0_15] : memref<2x200x256xf32, #tpu.memory_space<vmem>>, vector<1x8x256xf32>
    %50 = vector.shape_cast %49 : vector<1x8x256xf32> to vector<8x256xf32>
    %51 = vector.shape_cast %47 : vector<8x256xf32> to vector<1x8x256xf32>
    tpu.vector_store %arg5[%48, %c8, %c0_15], %51 {strides = array<i32>} : memref<2x200x256xf32, #tpu.memory_space<vmem>>, vector<1x8x256xf32>,
    %52 = vector.extract_strided_slice %17 {offsets = [0, 21], sizes = [8, 256], strides = [1, 1]} : vector<8x448xf32> to vector<8x256xf32>
    %c11_i32 = arith.constant 11 : i32
    %53 = vector.broadcast %c11_i32 : i32 to vector<1x256xi32>
    %54 = arith.cmpi slt, %34, %53 : vector<1x256xi32>
    %c0_i32_16 = arith.constant 0 : i32
    %55 = arith.sitofp %c0_i32_16 : i32 to f32
    %56 = vector.shape_cast %54 : vector<1x256xi1> to vector<1x256xi1>
    %57 = vector.broadcast %56 : vector<1x256xi1> to vector<8x256xi1>
    %58 = vector.broadcast %55 : f32 to vector<8x256xf32>
    %59 = arith.select %57, %52, %58 : vector<8x256xi1>, vector<8x256xf32>
    %60 = arith.index_cast %13 : i32 to index
    %c16 = arith.constant 16 : index
    %c0_17 = arith.constant 0 : index
    %61 = vector.load %arg5[%60, %c16, %c0_17] : memref<2x200x256xf32, #tpu.memory_space<vmem>>, vector<1x8x256xf32>
    %62 = vector.shape_cast %61 : vector<1x8x256xf32> to vector<8x256xf32>
    %63 = vector.shape_cast %59 : vector<8x256xf32> to vector<1x8x256xf32>
    tpu.vector_store %arg5[%60, %c16, %c0_17], %63 {strides = array<i32>} : memref<2x200x256xf32, #tpu.memory_space<vmem>>, vector<1x8x256xf32>,
    %64 = vector.extract_strided_slice %17 {offsets = [0, 45], sizes = [8, 256], strides = [1, 1]} : vector<8x448xf32> to vector<8x256xf32>
    %c3_i32 = arith.constant 3 : i32
    %65 = vector.broadcast %c3_i32 : i32 to vector<1x256xi32>
    %66 = arith.cmpi sge, %34, %65 : vector<1x256xi32>
    %c0_i32_18 = arith.constant 0 : i32
    %67 = arith.sitofp %c0_i32_18 : i32 to f32
    %68 = vector.shape_cast %66 : vector<1x256xi1> to vector<1x256xi1>
    %69 = vector.broadcast %68 : vector<1x256xi1> to vector<8x256xi1>
    %70 = vector.broadcast %67 : f32 to vector<8x256xf32>
    %71 = arith.select %69, %64, %70 : vector<8x256xi1>, vector<8x256xf32>
    %72 = arith.index_cast %13 : i32 to index
    %c24 = arith.constant 24 : index
    %c0_19 = arith.constant 0 : index
    %73 = vector.load %arg5[%72, %c24, %c0_19] : memref<2x200x256xf32, #tpu.memory_space<vmem>>, vector<1x8x256xf32>
    %74 = vector.shape_cast %73 : vector<1x8x256xf32> to vector<8x256xf32>
    %75 = vector.shape_cast %71 : vector<8x256xf32> to vector<1x8x256xf32>
    tpu.vector_store %arg5[%72, %c24, %c0_19], %75 {strides = array<i32>} : memref<2x200x256xf32, #tpu.memory_space<vmem>>, vector<1x8x256xf32>,
    %76 = vector.extract_strided_slice %17 {offsets = [0, 48], sizes = [8, 256], strides = [1, 1]} : vector<8x448xf32> to vector<8x256xf32>
    %77 = arith.index_cast %13 : i32 to index
    %c32 = arith.constant 32 : index
    %c0_20 = arith.constant 0 : index
    %78 = vector.load %arg5[%77, %c32, %c0_20] : memref<2x200x256xf32, #tpu.memory_space<vmem>>, vector<1x8x256xf32>
    %79 = vector.shape_cast %78 : vector<1x8x256xf32> to vector<8x256xf32>
    %80 = vector.shape_cast %76 : vector<8x256xf32> to vector<1x8x256xf32>
    tpu.vector_store %arg5[%77, %c32, %c0_20], %80 {strides = array<i32>} : memref<2x200x256xf32, #tpu.memory_space<vmem>>, vector<1x8x256xf32>,
    %81 = vector.extract_strided_slice %17 {offsets = [0, 51], sizes = [8, 256], strides = [1, 1]} : vector<8x448xf32> to vector<8x256xf32>
    %c13_i32 = arith.constant 13 : i32
    %82 = vector.broadcast %c13_i32 : i32 to vector<1x256xi32>
    %83 = arith.cmpi slt, %34, %82 : vector<1x256xi32>
    %c0_i32_21 = arith.constant 0 : i32
    %84 = arith.sitofp %c0_i32_21 : i32 to f32
    %85 = vector.shape_cast %83 : vector<1x256xi1> to vector<1x256xi1>
    %86 = vector.broadcast %85 : vector<1x256xi1> to vector<8x256xi1>
    %87 = vector.broadcast %84 : f32 to vector<8x256xf32>
    %88 = arith.select %86, %81, %87 : vector<8x256xi1>, vector<8x256xf32>
    %89 = arith.index_cast %13 : i32 to index
    %c40 = arith.constant 40 : index
    %c0_22 = arith.constant 0 : index
    %90 = vector.load %arg5[%89, %c40, %c0_22] : memref<2x200x256xf32, #tpu.memory_space<vmem>>, vector<1x8x256xf32>
    %91 = vector.shape_cast %90 : vector<1x8x256xf32> to vector<8x256xf32>
    %92 = vector.shape_cast %88 : vector<8x256xf32> to vector<1x8x256xf32>
    tpu.vector_store %arg5[%89, %c40, %c0_22], %92 {strides = array<i32>} : memref<2x200x256xf32, #tpu.memory_space<vmem>>, vector<1x8x256xf32>,
    %93 = vector.extract_strided_slice %17 {offsets = [0, 79], sizes = [8, 256], strides = [1, 1]} : vector<8x448xf32> to vector<8x256xf32>
    %c1_i32_23 = arith.constant 1 : i32
    %94 = vector.broadcast %c1_i32_23 : i32 to vector<1x256xi32>
    %95 = arith.cmpi sge, %34, %94 : vector<1x256xi32>
    %c0_i32_24 = arith.constant 0 : i32
    %96 = arith.sitofp %c0_i32_24 : i32 to f32
    %97 = vector.shape_cast %95 : vector<1x256xi1> to vector<1x256xi1>
    %98 = vector.broadcast %97 : vector<1x256xi1> to vector<8x256xi1>
    %99 = vector.broadcast %96 : f32 to vector<8x256xf32>
    %100 = arith.select %98, %93, %99 : vector<8x256xi1>, vector<8x256xf32>
    %101 = arith.index_cast %13 : i32 to index
    %c48 = arith.constant 48 : index
    %c0_25 = arith.constant 0 : index
    %102 = vector.load %arg5[%101, %c48, %c0_25] : memref<2x200x256xf32, #tpu.memory_space<vmem>>, vector<1x8x256xf32>
    %103 = vector.shape_cast %102 : vector<1x8x256xf32> to vector<8x256xf32>
    %104 = vector.shape_cast %100 : vector<8x256xf32> to vector<1x8x256xf32>
    tpu.vector_store %arg5[%101, %c48, %c0_25], %104 {strides = array<i32>} : memref<2x200x256xf32, #tpu.memory_space<vmem>>, vector<1x8x256xf32>,
    %105 = vector.extract_strided_slice %17 {offsets = [0, 80], sizes = [8, 256], strides = [1, 1]} : vector<8x448xf32> to vector<8x256xf32>
    %106 = arith.index_cast %13 : i32 to index
    %c56 = arith.constant 56 : index
    %c0_26 = arith.constant 0 : index
    %107 = vector.load %arg5[%106, %c56, %c0_26] : memref<2x200x256xf32, #tpu.memory_space<vmem>>, vector<1x8x256xf32>
    %108 = vector.shape_cast %107 : vector<1x8x256xf32> to vector<8x256xf32>
    %109 = vector.shape_cast %105 : vector<8x256xf32> to vector<1x8x256xf32>
    tpu.vector_store %arg5[%106, %c56, %c0_26], %109 {strides = array<i32>} : memref<2x200x256xf32, #tpu.memory_space<vmem>>, vector<1x8x256xf32>,
    %110 = vector.extract_strided_slice %17 {offsets = [0, 81], sizes = [8, 256], strides = [1, 1]} : vector<8x448xf32> to vector<8x256xf32>
    %c15_i32 = arith.constant 15 : i32
    %111 = vector.broadcast %c15_i32 : i32 to vector<1x256xi32>
    %112 = arith.cmpi slt, %34, %111 : vector<1x256xi32>
    %c0_i32_27 = arith.constant 0 : i32
    %113 = arith.sitofp %c0_i32_27 : i32 to f32
    %114 = vector.shape_cast %112 : vector<1x256xi1> to vector<1x256xi1>
    %115 = vector.broadcast %114 : vector<1x256xi1> to vector<8x256xi1>
    %116 = vector.broadcast %113 : f32 to vector<8x256xf32>
    %117 = arith.select %115, %110, %116 : vector<8x256xi1>, vector<8x256xf32>
    %118 = arith.index_cast %13 : i32 to index
    %c64 = arith.constant 64 : index
    %c0_28 = arith.constant 0 : index
    %119 = vector.load %arg5[%118, %c64, %c0_28] : memref<2x200x256xf32, #tpu.memory_space<vmem>>, vector<1x8x256xf32>
    %120 = vector.shape_cast %119 : vector<1x8x256xf32> to vector<8x256xf32>
    %121 = vector.shape_cast %117 : vector<8x256xf32> to vector<1x8x256xf32>
    tpu.vector_store %arg5[%118, %c64, %c0_28], %121 {strides = array<i32>} : memref<2x200x256xf32, #tpu.memory_space<vmem>>, vector<1x8x256xf32>,
    %122 = vector.extract_strided_slice %17 {offsets = [0, 91], sizes = [8, 256], strides = [1, 1]} : vector<8x448xf32> to vector<8x256xf32>
    %c5_i32_29 = arith.constant 5 : i32
    %123 = vector.broadcast %c5_i32_29 : i32 to vector<1x256xi32>
    %124 = arith.cmpi sge, %34, %123 : vector<1x256xi32>
    %c0_i32_30 = arith.constant 0 : i32
    %125 = arith.sitofp %c0_i32_30 : i32 to f32
    %126 = vector.shape_cast %124 : vector<1x256xi1> to vector<1x256xi1>
    %127 = vector.broadcast %126 : vector<1x256xi1> to vector<8x256xi1>
    %128 = vector.broadcast %125 : f32 to vector<8x256xf32>
    %129 = arith.select %127, %122, %128 : vector<8x256xi1>, vector<8x256xf32>
    %130 = arith.index_cast %13 : i32 to index
    %c72 = arith.constant 72 : index
    %c0_31 = arith.constant 0 : index
    %131 = vector.load %arg5[%130, %c72, %c0_31] : memref<2x200x256xf32, #tpu.memory_space<vmem>>, vector<1x8x256xf32>
    %132 = vector.shape_cast %131 : vector<1x8x256xf32> to vector<8x256xf32>
    %133 = vector.shape_cast %129 : vector<8x256xf32> to vector<1x8x256xf32>
    tpu.vector_store %arg5[%130, %c72, %c0_31], %133 {strides = array<i32>} : memref<2x200x256xf32, #tpu.memory_space<vmem>>, vector<1x8x256xf32>,
    %134 = vector.extract_strided_slice %17 {offsets = [0, 93], sizes = [8, 256], strides = [1, 1]} : vector<8x448xf32> to vector<8x256xf32>
    %c3_i32_32 = arith.constant 3 : i32
    %135 = vector.broadcast %c3_i32_32 : i32 to vector<1x256xi32>
    %136 = arith.cmpi sge, %34, %135 : vector<1x256xi32>
    %c0_i32_33 = arith.constant 0 : i32
    %137 = arith.sitofp %c0_i32_33 : i32 to f32
    %138 = vector.shape_cast %136 : vector<1x256xi1> to vector<1x256xi1>
    %139 = vector.broadcast %138 : vector<1x256xi1> to vector<8x256xi1>
    %140 = vector.broadcast %137 : f32 to vector<8x256xf32>
    %141 = arith.select %139, %134, %140 : vector<8x256xi1>, vector<8x256xf32>
    %142 = arith.index_cast %13 : i32 to index
    %c80 = arith.constant 80 : index
    %c0_34 = arith.constant 0 : index
    %143 = vector.load %arg5[%142, %c80, %c0_34] : memref<2x200x256xf32, #tpu.memory_space<vmem>>, vector<1x8x256xf32>
    %144 = vector.shape_cast %143 : vector<1x8x256xf32> to vector<8x256xf32>
    %145 = vector.shape_cast %141 : vector<8x256xf32> to vector<1x8x256xf32>
    tpu.vector_store %arg5[%142, %c80, %c0_34], %145 {strides = array<i32>} : memref<2x200x256xf32, #tpu.memory_space<vmem>>, vector<1x8x256xf32>,
    %146 = vector.extract_strided_slice %17 {offsets = [0, 95], sizes = [8, 256], strides = [1, 1]} : vector<8x448xf32> to vector<8x256xf32>
    %c1_i32_35 = arith.constant 1 : i32
    %147 = vector.broadcast %c1_i32_35 : i32 to vector<1x256xi32>
    %148 = arith.cmpi sge, %34, %147 : vector<1x256xi32>
    %c0_i32_36 = arith.constant 0 : i32
    %149 = arith.sitofp %c0_i32_36 : i32 to f32
    %150 = vector.shape_cast %148 : vector<1x256xi1> to vector<1x256xi1>
    %151 = vector.broadcast %150 : vector<1x256xi1> to vector<8x256xi1>
    %152 = vector.broadcast %149 : f32 to vector<8x256xf32>
    %153 = arith.select %151, %146, %152 : vector<8x256xi1>, vector<8x256xf32>
    %154 = arith.index_cast %13 : i32 to index
    %c88 = arith.constant 88 : index
    %c0_37 = arith.constant 0 : index
    %155 = vector.load %arg5[%154, %c88, %c0_37] : memref<2x200x256xf32, #tpu.memory_space<vmem>>, vector<1x8x256xf32>
    %156 = vector.shape_cast %155 : vector<1x8x256xf32> to vector<8x256xf32>
    %157 = vector.shape_cast %153 : vector<8x256xf32> to vector<1x8x256xf32>
    tpu.vector_store %arg5[%154, %c88, %c0_37], %157 {strides = array<i32>} : memref<2x200x256xf32, #tpu.memory_space<vmem>>, vector<1x8x256xf32>,
    %158 = vector.extract_strided_slice %17 {offsets = [0, 96], sizes = [8, 256], strides = [1, 1]} : vector<8x448xf32> to vector<8x256xf32>
    %159 = arith.index_cast %13 : i32 to index
    %c96 = arith.constant 96 : index
    %c0_38 = arith.constant 0 : index
    %160 = vector.load %arg5[%159, %c96, %c0_38] : memref<2x200x256xf32, #tpu.memory_space<vmem>>, vector<1x8x256xf32>
    %161 = vector.shape_cast %160 : vector<1x8x256xf32> to vector<8x256xf32>
    %162 = vector.shape_cast %158 : vector<8x256xf32> to vector<1x8x256xf32>
    tpu.vector_store %arg5[%159, %c96, %c0_38], %162 {strides = array<i32>} : memref<2x200x256xf32, #tpu.memory_space<vmem>>, vector<1x8x256xf32>,
    %163 = vector.extract_strided_slice %17 {offsets = [0, 97], sizes = [8, 256], strides = [1, 1]} : vector<8x448xf32> to vector<8x256xf32>
    %c15_i32_39 = arith.constant 15 : i32
    %164 = vector.broadcast %c15_i32_39 : i32 to vector<1x256xi32>
    %165 = arith.cmpi slt, %34, %164 : vector<1x256xi32>
    %c0_i32_40 = arith.constant 0 : i32
    %166 = arith.sitofp %c0_i32_40 : i32 to f32
    %167 = vector.shape_cast %165 : vector<1x256xi1> to vector<1x256xi1>
    %168 = vector.broadcast %167 : vector<1x256xi1> to vector<8x256xi1>
    %169 = vector.broadcast %166 : f32 to vector<8x256xf32>
    %170 = arith.select %168, %163, %169 : vector<8x256xi1>, vector<8x256xf32>
    %171 = arith.index_cast %13 : i32 to index
    %c104 = arith.constant 104 : index
    %c0_41 = arith.constant 0 : index
    %172 = vector.load %arg5[%171, %c104, %c0_41] : memref<2x200x256xf32, #tpu.memory_space<vmem>>, vector<1x8x256xf32>
    %173 = vector.shape_cast %172 : vector<1x8x256xf32> to vector<8x256xf32>
    %174 = vector.shape_cast %170 : vector<8x256xf32> to vector<1x8x256xf32>
    tpu.vector_store %arg5[%171, %c104, %c0_41], %174 {strides = array<i32>} : memref<2x200x256xf32, #tpu.memory_space<vmem>>, vector<1x8x256xf32>,
    %175 = vector.extract_strided_slice %17 {offsets = [0, 99], sizes = [8, 256], strides = [1, 1]} : vector<8x448xf32> to vector<8x256xf32>
    %c13_i32_42 = arith.constant 13 : i32
    %176 = vector.broadcast %c13_i32_42 : i32 to vector<1x256xi32>
    %177 = arith.cmpi slt, %34, %176 : vector<1x256xi32>
    %c0_i32_43 = arith.constant 0 : i32
    %178 = arith.sitofp %c0_i32_43 : i32 to f32
    %179 = vector.shape_cast %177 : vector<1x256xi1> to vector<1x256xi1>
    %180 = vector.broadcast %179 : vector<1x256xi1> to vector<8x256xi1>
    %181 = vector.broadcast %178 : f32 to vector<8x256xf32>
    %182 = arith.select %180, %175, %181 : vector<8x256xi1>, vector<8x256xf32>
    %183 = arith.index_cast %13 : i32 to index
    %c112 = arith.constant 112 : index
    %c0_44 = arith.constant 0 : index
    %184 = vector.load %arg5[%183, %c112, %c0_44] : memref<2x200x256xf32, #tpu.memory_space<vmem>>, vector<1x8x256xf32>
    %185 = vector.shape_cast %184 : vector<1x8x256xf32> to vector<8x256xf32>
    %186 = vector.shape_cast %182 : vector<8x256xf32> to vector<1x8x256xf32>
    tpu.vector_store %arg5[%183, %c112, %c0_44], %186 {strides = array<i32>} : memref<2x200x256xf32, #tpu.memory_space<vmem>>, vector<1x8x256xf32>,
    %187 = vector.extract_strided_slice %17 {offsets = [0, 101], sizes = [8, 256], strides = [1, 1]} : vector<8x448xf32> to vector<8x256xf32>
    %c11_i32_45 = arith.constant 11 : i32
    %188 = vector.broadcast %c11_i32_45 : i32 to vector<1x256xi32>
    %189 = arith.cmpi slt, %34, %188 : vector<1x256xi32>
    %c0_i32_46 = arith.constant 0 : i32
    %190 = arith.sitofp %c0_i32_46 : i32 to f32
    %191 = vector.shape_cast %189 : vector<1x256xi1> to vector<1x256xi1>
    %192 = vector.broadcast %191 : vector<1x256xi1> to vector<8x256xi1>
    %193 = vector.broadcast %190 : f32 to vector<8x256xf32>
    %194 = arith.select %192, %187, %193 : vector<8x256xi1>, vector<8x256xf32>
    %195 = arith.index_cast %13 : i32 to index
    %c120 = arith.constant 120 : index
    %c0_47 = arith.constant 0 : index
    %196 = vector.load %arg5[%195, %c120, %c0_47] : memref<2x200x256xf32, #tpu.memory_space<vmem>>, vector<1x8x256xf32>
    %197 = vector.shape_cast %196 : vector<1x8x256xf32> to vector<8x256xf32>
    %198 = vector.shape_cast %194 : vector<8x256xf32> to vector<1x8x256xf32>
    tpu.vector_store %arg5[%195, %c120, %c0_47], %198 {strides = array<i32>} : memref<2x200x256xf32, #tpu.memory_space<vmem>>, vector<1x8x256xf32>,
    %199 = vector.extract_strided_slice %17 {offsets = [0, 111], sizes = [8, 256], strides = [1, 1]} : vector<8x448xf32> to vector<8x256xf32>
    %c1_i32_48 = arith.constant 1 : i32
    %200 = vector.broadcast %c1_i32_48 : i32 to vector<1x256xi32>
    %201 = arith.cmpi sge, %34, %200 : vector<1x256xi32>
    %c0_i32_49 = arith.constant 0 : i32
    %202 = arith.sitofp %c0_i32_49 : i32 to f32
    %203 = vector.shape_cast %201 : vector<1x256xi1> to vector<1x256xi1>
    %204 = vector.broadcast %203 : vector<1x256xi1> to vector<8x256xi1>
    %205 = vector.broadcast %202 : f32 to vector<8x256xf32>
    %206 = arith.select %204, %199, %205 : vector<8x256xi1>, vector<8x256xf32>
    %207 = arith.index_cast %13 : i32 to index
    %c128 = arith.constant 128 : index
    %c0_50 = arith.constant 0 : index
    %208 = vector.load %arg5[%207, %c128, %c0_50] : memref<2x200x256xf32, #tpu.memory_space<vmem>>, vector<1x8x256xf32>
    %209 = vector.shape_cast %208 : vector<1x8x256xf32> to vector<8x256xf32>
    %210 = vector.shape_cast %206 : vector<8x256xf32> to vector<1x8x256xf32>
    tpu.vector_store %arg5[%207, %c128, %c0_50], %210 {strides = array<i32>} : memref<2x200x256xf32, #tpu.memory_space<vmem>>, vector<1x8x256xf32>,
    %211 = vector.extract_strided_slice %17 {offsets = [0, 112], sizes = [8, 256], strides = [1, 1]} : vector<8x448xf32> to vector<8x256xf32>
    %212 = arith.index_cast %13 : i32 to index
    %c136 = arith.constant 136 : index
    %c0_51 = arith.constant 0 : index
    %213 = vector.load %arg5[%212, %c136, %c0_51] : memref<2x200x256xf32, #tpu.memory_space<vmem>>, vector<1x8x256xf32>
    %214 = vector.shape_cast %213 : vector<1x8x256xf32> to vector<8x256xf32>
    %215 = vector.shape_cast %211 : vector<8x256xf32> to vector<1x8x256xf32>
    tpu.vector_store %arg5[%212, %c136, %c0_51], %215 {strides = array<i32>} : memref<2x200x256xf32, #tpu.memory_space<vmem>>, vector<1x8x256xf32>,
    %216 = vector.extract_strided_slice %17 {offsets = [0, 113], sizes = [8, 256], strides = [1, 1]} : vector<8x448xf32> to vector<8x256xf32>
    %c15_i32_52 = arith.constant 15 : i32
    %217 = vector.broadcast %c15_i32_52 : i32 to vector<1x256xi32>
    %218 = arith.cmpi slt, %34, %217 : vector<1x256xi32>
    %c0_i32_53 = arith.constant 0 : i32
    %219 = arith.sitofp %c0_i32_53 : i32 to f32
    %220 = vector.shape_cast %218 : vector<1x256xi1> to vector<1x256xi1>
    %221 = vector.broadcast %220 : vector<1x256xi1> to vector<8x256xi1>
    %222 = vector.broadcast %219 : f32 to vector<8x256xf32>
    %223 = arith.select %221, %216, %222 : vector<8x256xi1>, vector<8x256xf32>
    %224 = arith.index_cast %13 : i32 to index
    %c144 = arith.constant 144 : index
    %c0_54 = arith.constant 0 : index
    %225 = vector.load %arg5[%224, %c144, %c0_54] : memref<2x200x256xf32, #tpu.memory_space<vmem>>, vector<1x8x256xf32>
    %226 = vector.shape_cast %225 : vector<1x8x256xf32> to vector<8x256xf32>
    %227 = vector.shape_cast %223 : vector<8x256xf32> to vector<1x8x256xf32>
    tpu.vector_store %arg5[%224, %c144, %c0_54], %227 {strides = array<i32>} : memref<2x200x256xf32, #tpu.memory_space<vmem>>, vector<1x8x256xf32>,
    %228 = vector.extract_strided_slice %17 {offsets = [0, 141], sizes = [8, 256], strides = [1, 1]} : vector<8x448xf32> to vector<8x256xf32>
    %c3_i32_55 = arith.constant 3 : i32
    %229 = vector.broadcast %c3_i32_55 : i32 to vector<1x256xi32>
    %230 = arith.cmpi sge, %34, %229 : vector<1x256xi32>
    %c0_i32_56 = arith.constant 0 : i32
    %231 = arith.sitofp %c0_i32_56 : i32 to f32
    %232 = vector.shape_cast %230 : vector<1x256xi1> to vector<1x256xi1>
    %233 = vector.broadcast %232 : vector<1x256xi1> to vector<8x256xi1>
    %234 = vector.broadcast %231 : f32 to vector<8x256xf32>
    %235 = arith.select %233, %228, %234 : vector<8x256xi1>, vector<8x256xf32>
    %236 = arith.index_cast %13 : i32 to index
    %c152 = arith.constant 152 : index
    %c0_57 = arith.constant 0 : index
    %237 = vector.load %arg5[%236, %c152, %c0_57] : memref<2x200x256xf32, #tpu.memory_space<vmem>>, vector<1x8x256xf32>
    %238 = vector.shape_cast %237 : vector<1x8x256xf32> to vector<8x256xf32>
    %239 = vector.shape_cast %235 : vector<8x256xf32> to vector<1x8x256xf32>
    tpu.vector_store %arg5[%236, %c152, %c0_57], %239 {strides = array<i32>} : memref<2x200x256xf32, #tpu.memory_space<vmem>>, vector<1x8x256xf32>,
    %240 = vector.extract_strided_slice %17 {offsets = [0, 144], sizes = [8, 256], strides = [1, 1]} : vector<8x448xf32> to vector<8x256xf32>
    %241 = arith.index_cast %13 : i32 to index
    %c160 = arith.constant 160 : index
    %c0_58 = arith.constant 0 : index
    %242 = vector.load %arg5[%241, %c160, %c0_58] : memref<2x200x256xf32, #tpu.memory_space<vmem>>, vector<1x8x256xf32>
    %243 = vector.shape_cast %242 : vector<1x8x256xf32> to vector<8x256xf32>
    %244 = vector.shape_cast %240 : vector<8x256xf32> to vector<1x8x256xf32>
    tpu.vector_store %arg5[%241, %c160, %c0_58], %244 {strides = array<i32>} : memref<2x200x256xf32, #tpu.memory_space<vmem>>, vector<1x8x256xf32>,
    %245 = vector.extract_strided_slice %17 {offsets = [0, 147], sizes = [8, 256], strides = [1, 1]} : vector<8x448xf32> to vector<8x256xf32>
    %c13_i32_59 = arith.constant 13 : i32
    %246 = vector.broadcast %c13_i32_59 : i32 to vector<1x256xi32>
    %247 = arith.cmpi slt, %34, %246 : vector<1x256xi32>
    %c0_i32_60 = arith.constant 0 : i32
    %248 = arith.sitofp %c0_i32_60 : i32 to f32
    %249 = vector.shape_cast %247 : vector<1x256xi1> to vector<1x256xi1>
    %250 = vector.broadcast %249 : vector<1x256xi1> to vector<8x256xi1>
    %251 = vector.broadcast %248 : f32 to vector<8x256xf32>
    %252 = arith.select %250, %245, %251 : vector<8x256xi1>, vector<8x256xf32>
    %253 = arith.index_cast %13 : i32 to index
    %c168 = arith.constant 168 : index
    %c0_61 = arith.constant 0 : index
    %254 = vector.load %arg5[%253, %c168, %c0_61] : memref<2x200x256xf32, #tpu.memory_space<vmem>>, vector<1x8x256xf32>
    %255 = vector.shape_cast %254 : vector<1x8x256xf32> to vector<8x256xf32>
    %256 = vector.shape_cast %252 : vector<8x256xf32> to vector<1x8x256xf32>
    tpu.vector_store %arg5[%253, %c168, %c0_61], %256 {strides = array<i32>} : memref<2x200x256xf32, #tpu.memory_space<vmem>>, vector<1x8x256xf32>,
    %257 = vector.extract_strided_slice %17 {offsets = [0, 171], sizes = [8, 256], strides = [1, 1]} : vector<8x448xf32> to vector<8x256xf32>
    %c5_i32_62 = arith.constant 5 : i32
    %258 = vector.broadcast %c5_i32_62 : i32 to vector<1x256xi32>
    %259 = arith.cmpi sge, %34, %258 : vector<1x256xi32>
    %c0_i32_63 = arith.constant 0 : i32
    %260 = arith.sitofp %c0_i32_63 : i32 to f32
    %261 = vector.shape_cast %259 : vector<1x256xi1> to vector<1x256xi1>
    %262 = vector.broadcast %261 : vector<1x256xi1> to vector<8x256xi1>
    %263 = vector.broadcast %260 : f32 to vector<8x256xf32>
    %264 = arith.select %262, %257, %263 : vector<8x256xi1>, vector<8x256xf32>
    %265 = arith.index_cast %13 : i32 to index
    %c176 = arith.constant 176 : index
    %c0_64 = arith.constant 0 : index
    %266 = vector.load %arg5[%265, %c176, %c0_64] : memref<2x200x256xf32, #tpu.memory_space<vmem>>, vector<1x8x256xf32>
    %267 = vector.shape_cast %266 : vector<1x8x256xf32> to vector<8x256xf32>
    %268 = vector.shape_cast %264 : vector<8x256xf32> to vector<1x8x256xf32>
    tpu.vector_store %arg5[%265, %c176, %c0_64], %268 {strides = array<i32>} : memref<2x200x256xf32, #tpu.memory_space<vmem>>, vector<1x8x256xf32>,
    %269 = vector.extract_strided_slice %17 {offsets = [0, 176], sizes = [8, 256], strides = [1, 1]} : vector<8x448xf32> to vector<8x256xf32>
    %270 = arith.index_cast %13 : i32 to index
    %c184 = arith.constant 184 : index
    %c0_65 = arith.constant 0 : index
    %271 = vector.load %arg5[%270, %c184, %c0_65] : memref<2x200x256xf32, #tpu.memory_space<vmem>>, vector<1x8x256xf32>
    %272 = vector.shape_cast %271 : vector<1x8x256xf32> to vector<8x256xf32>
    %273 = vector.shape_cast %269 : vector<8x256xf32> to vector<1x8x256xf32>
    tpu.vector_store %arg5[%270, %c184, %c0_65], %273 {strides = array<i32>} : memref<2x200x256xf32, #tpu.memory_space<vmem>>, vector<1x8x256xf32>,
    %274 = vector.extract_strided_slice %17 {offsets = [0, 181], sizes = [8, 256], strides = [1, 1]} : vector<8x448xf32> to vector<8x256xf32>
    %c11_i32_66 = arith.constant 11 : i32
    %275 = vector.broadcast %c11_i32_66 : i32 to vector<1x256xi32>
    %276 = arith.cmpi slt, %34, %275 : vector<1x256xi32>
    %c0_i32_67 = arith.constant 0 : i32
    %277 = arith.sitofp %c0_i32_67 : i32 to f32
    %278 = vector.shape_cast %276 : vector<1x256xi1> to vector<1x256xi1>
    %279 = vector.broadcast %278 : vector<1x256xi1> to vector<8x256xi1>
    %280 = vector.broadcast %277 : f32 to vector<8x256xf32>
    %281 = arith.select %279, %274, %280 : vector<8x256xi1>, vector<8x256xf32>
    %282 = arith.index_cast %13 : i32 to index
    %c192 = arith.constant 192 : index
    %c0_68 = arith.constant 0 : index
    %283 = vector.load %arg5[%282, %c192, %c0_68] : memref<2x200x256xf32, #tpu.memory_space<vmem>>, vector<1x8x256xf32>
    %284 = vector.shape_cast %283 : vector<1x8x256xf32> to vector<8x256xf32>
    %285 = vector.shape_cast %281 : vector<8x256xf32> to vector<1x8x256xf32>
    tpu.vector_store %arg5[%282, %c192, %c0_68], %285 {strides = array<i32>} : memref<2x200x256xf32, #tpu.memory_space<vmem>>, vector<1x8x256xf32>,
    %c0_69 = arith.constant 0 : index
    %c0_70 = arith.constant 0 : index
    %286 = vector.load %arg3[%c0_69, %c0_70] : memref<8x200xf32, #tpu.memory_space<vmem>>, vector<8x200xf32>
    %287 = arith.index_cast %13 : i32 to index
    %c0_71 = arith.constant 0 : index
    %c0_72 = arith.constant 0 : index
    %288 = vector.load %arg5[%287, %c0_71, %c0_72] : memref<2x200x256xf32, #tpu.memory_space<vmem>>, vector<1x200x256xf32>
    %289 = vector.shape_cast %288 : vector<1x200x256xf32> to vector<200x256xf32>
    %cst = arith.constant dense<0.000000e+00> : vector<8x256xf32>
    %290 = tpu.matmul %286, %289, %cst {dimension_numbers = #tpu.dot_dimension_numbers<[1], [0], [0], [1], [0, 0, 1, 1], [], []>} : vector<8x200xf32>, vector<200x256xf32>, vector<8x256xf32> -> vector<8x256xf32>
    %c0_73 = arith.constant 0 : index
    %c0_74 = arith.constant 0 : index
    %c0_75 = arith.constant 0 : index
    %291 = vector.load %arg4[%c0_73, %c0_74, %c0_75] : memref<1x8x256xf32, #tpu.memory_space<vmem>>, vector<1x8x256xf32>
    %292 = vector.shape_cast %291 : vector<1x8x256xf32> to vector<8x256xf32>
    %293 = vector.shape_cast %290 : vector<8x256xf32> to vector<1x8x256xf32>
    tpu.vector_store %arg4[%c0_73, %c0_74, %c0_75], %293 {strides = array<i32>} : memref<1x8x256xf32, #tpu.memory_space<vmem>>, vector<1x8x256xf32>,
    return
  }
  func.func @transform_0(%arg0: i32, %arg1: i32) -> (i32, i32, i32, i32) {
    %c0_i32 = arith.constant 0 : i32
    %c0_i32_0 = arith.constant 0 : i32
    %c0_i32_1 = arith.constant 0 : i32
    %c0_i32_2 = arith.constant 0 : i32
    return %arg0, %c0_i32, %c0_i32_0, %c0_i32_1 : i32, i32, i32, i32
  }
  func.func @transform_1(%arg0: i32, %arg1: i32) -> (i32, i32) {
    %c0_i32 = arith.constant 0 : i32
    %c0_i32_0 = arith.constant 0 : i32
    %c0_i32_1 = arith.constant 0 : i32
    return %c0_i32, %c0_i32_0 : i32, i32
  }
  func.func @transform_2(%arg0: i32, %arg1: i32) -> (i32, i32, i32) {
    %c0_i32 = arith.constant 0 : i32
    %c0_i32_0 = arith.constant 0 : i32
    return %arg0, %c0_i32, %arg1 : i32, i32, i32
  }
}

</mosaic_0001>

<llo_original>
// kernel: multi_scale_conv.1
$region0: #{multi_scale_conv.1}
  #allocation0 [shape = 'u32[]', space=smem, size = 0x4, offset = 0x4, fixed_abs, tag = 'smem constant byte address 0x4 - core index']
  #allocation1 [shape = 'u32[144,128]{1,0:T(1,128)}', space=vmem, size = 0x12000, scoped, tag = 'internal scratch']
  #allocation2 [shape = 'f32[2,200,256]{2,1,0:T(8,128)}', space=vmem, size = 0x64000, scoped, tag = 'scratch operand']
  %s0 = inlined_call_operand.vmem [shape: f32[2,8,28,16], index: 0, kind: input, shape index: {}]
  %s1 = inlined_call_operand.vmem [shape: f32[8,200], index: 1, kind: input, shape index: {}]
  %s2 = inlined_call_operand.vmem [shape: f32[2,8,256], index: 2, kind: output, shape index: {}]
  %s3 = sld [smem:[#allocation0]]
  $region41: #{multi_scale_conv.1} parent=0
    _
  %s5 = ssub.s32 1, %s3
  %s6 = scalar_select 0, %s5, %s3
  loop: start=0, step=1, limit=4
  $region2: #{multi_scale_conv.1} parent=0 // loop_pre_header
    _
  $region3: #{multi_scale_conv.1} parent=0 // loop_header
    %s8 = sphi 0, %s12
    %p9 = scmp.ge.s32.totalorder %s8, 4
    %s15 = sphi 0, %s27
    %s16 = sphi 0, %s23
    %s17 = sphi 0, %s15
    %s18 = sphi 0, %s16
    %s19 = sphi 0, %s17
    %s20 = sphi 0, %s18
    %s30 = sphi 0, %s32
    %s33 = sphi 0, %s30
    %s34 = sphi 0, %s33
    %s50 = sphi 0, %s34
    %s54 = sphi 0, %s54
    %s56 = sphi 0, %s54
    %s57 = sphi 0, %s56
    %s71 = sphi 0, %s57
    %s79 = sphi 0, %s81
    %s82 = sphi 0, %s79
    %s83 = sphi 0, %s82
    %s99 = sphi 0, %s83
  $region4: #{multi_scale_conv.1} parent=0 // loop_header_branch
    %11 = sbr.rel (%p9) target = $region8
  $region5: #{multi_scale_conv.1} parent=0 // loop_body
    %s13 = ssub.s32 %s8, 1
    %s14 = ssub.s32 %s8, 2
    %s21 = sadd.s32 1, %s16
    %p22 = scmp.ge.s32.totalorder %s21, 1
    %s23 = scalar_select %p22, 0, %s21
    %s24 = sadd.s32 1, %s15
    %s25 = scalar_select %p22, %s24, %s15
    %p26 = scmp.ge.s32.totalorder %s25, 2
    %s27 = scalar_select %p26, 0, %s25
    %s28 = ssub.s32 %s15, %s27
    %p29 = scmp.eq.s32.totalorder %s28, 0
    %s31 = sadd.s32 %s30, 1
    %s32 = scalar_select %p29, %s30, %s31
    %p35 = pneg %p29
    %p36 = scmp.eq.s32.totalorder %s8, 1
    %p37 = por %p35, %p36
    %p38 = scmp.ne.s32.totalorder %s30, %s33
    %p39 = scmp.eq.s32.totalorder %s8, 0
    %p40 = por %p38, %p39
    %p41 = scmp.ne.s32.totalorder %s30, %s33
    %p42 = scmp.eq.s32.totalorder %s13, 1
    %p43 = por %p41, %p42
    %p44 = scmp.ne.s32.totalorder %s33, %s34
    %p45 = scmp.eq.s32.totalorder %s13, 0
    %p46 = por %p44, %p45
    %p47 = scmp.ne.s32.totalorder %s33, %s34
    %p48 = scmp.eq.s32.totalorder %s14, 1
    %p49 = por %p47, %p48
    %p51 = scmp.ne.s32.totalorder %s34, %s50
    %p52 = scmp.eq.s32.totalorder %s14, 0
    %p53 = por %p51, %p52
    %s55 = sadd.s32 %s54, 1
    %p58 = scmp.eq.s32.totalorder %s8, 1
    %p59 = scmp.ne.s32.totalorder %s54, %s56
    %p60 = scmp.eq.s32.totalorder %s8, 0
    %p61 = por %p59, %p60
    %p62 = scmp.ne.s32.totalorder %s54, %s56
    %p63 = scmp.eq.s32.totalorder %s13, 1
    %p64 = por %p62, %p63
    %p65 = scmp.ne.s32.totalorder %s56, %s57
    %p66 = scmp.eq.s32.totalorder %s13, 0
    %p67 = por %p65, %p66
    %p68 = scmp.ne.s32.totalorder %s56, %s57
    %p69 = scmp.eq.s32.totalorder %s14, 1
    %p70 = por %p68, %p69
    %p72 = scmp.ne.s32.totalorder %s57, %s71
    %p73 = scmp.eq.s32.totalorder %s14, 0
    %p74 = por %p72, %p73
    %s75 = ssub.s32 %s15, %s27
    %s76 = ssub.s32 %s16, %s23
    %s77 = sor.u32 %s75, %s76
    %p78 = scmp.eq.s32.totalorder %s77, 0
    %s80 = sadd.s32 %s79, 1
    %s81 = scalar_select %p78, %s79, %s80
    %p84 = pneg %p78
    %p85 = scmp.eq.s32.totalorder %s8, 1
    %p86 = por %p84, %p85
    %p87 = scmp.ne.s32.totalorder %s79, %s82
    %p88 = scmp.eq.s32.totalorder %s8, 0
    %p89 = por %p87, %p88
    %p90 = scmp.ne.s32.totalorder %s79, %s82
    %p91 = scmp.eq.s32.totalorder %s13, 1
    %p92 = por %p90, %p91
    %p93 = scmp.ne.s32.totalorder %s82, %s83
    %p94 = scmp.eq.s32.totalorder %s13, 0
    %p95 = por %p93, %p94
    %p96 = scmp.ne.s32.totalorder %s82, %s83
    %p97 = scmp.eq.s32.totalorder %s14, 1
    %p98 = por %p96, %p97
    %p100 = scmp.ne.s32.totalorder %s83, %s99
    %p101 = scmp.eq.s32.totalorder %s14, 0
    %p102 = por %p100, %p101
    %p103 = scmp.le.s32.totalorder 1, %s8
    %p104 = scmp.lt.s32.totalorder %s8, 3
    %p105 = pnand %p103, %p104
    %p106 = pneg %p105
    // Predicated region
    $region9: #{multi_scale_conv.1} parent=5 // pred_check
      _
    $region10: #{multi_scale_conv.1} parent=5 // pred_check_branch
      %108 = sbr.rel (%p105) target = $region12
    $region11: #{multi_scale_conv.1} parent=5 // pred_region
      %s109 = ssub.s32 %s8, 1
      // Predicated region
      $region13: #{multi_scale_conv.1} parent=11 // pred_check
        %p110 = pneg %p67
      $region14: #{multi_scale_conv.1} parent=11 // pred_check_branch
        %112 = sbr.rel (%p110) target = $region16
      $region15: #{multi_scale_conv.1} parent=11 // pred_region
        _
      $region16: #{multi_scale_conv.1} parent=11 // pred_fallthru
        _
    $region12: #{multi_scale_conv.1} parent=5 // pred_fallthru
      _
    %p113 = scmp.lt.s32.totalorder %s8, 2
    // Predicated region
    $region17: #{multi_scale_conv.1} parent=5 // pred_check
      %p114 = pneg %p113
    $region18: #{multi_scale_conv.1} parent=5 // pred_check_branch
      %116 = sbr.rel (%p114) target = $region20
    $region19: #{multi_scale_conv.1} parent=5 // pred_region
      // Predicated region
      $region21: #{multi_scale_conv.1} parent=19 // pred_check
        %p117 = pneg %p40
      $region22: #{multi_scale_conv.1} parent=19 // pred_check_branch
        %119 = sbr.rel (%p117) target = $region24
      $region23: #{multi_scale_conv.1} parent=19 // pred_region
        %p120 = scmp.lt.s32.totalorder %s15, 1
        %s121 = scalar_select %p120, %s15, 1
        %s122 = smul.addr %s121, 32
        %s123 = smul.addr %s122, 8
        %s124 = scalar_lea.vmem %s0, %s123
      $region24: #{multi_scale_conv.1} parent=19 // pred_fallthru
        _
    $region20: #{multi_scale_conv.1} parent=5 // pred_fallthru
      _
    %p125 = scmp.le.s32.totalorder 1, %s8
    %p126 = scmp.lt.s32.totalorder %s8, 3
    %p127 = pnand %p125, %p126
    %p128 = pneg %p127
    // Predicated region
    $region25: #{multi_scale_conv.1} parent=5 // pred_check
      _
    $region26: #{multi_scale_conv.1} parent=5 // pred_check_branch
      %130 = sbr.rel (%p127) target = $region28
    $region27: #{multi_scale_conv.1} parent=5 // pred_region
      %s131 = ssub.s32 %s8, 1
      %p132 = scmp.lt.s32.totalorder %s17, 1
      %s133 = scalar_select %p132, %s17, 1
      %s134 = smul.addr %s133, 32
      %s135 = smul.addr %s134, 8
      %s136 = scalar_lea.vmem %s0, %s135
      %p137 = pneg %p46
      %p138 = pneg %p43
      %p139 = pneg %p67
      %p140 = pneg %p64
      %p141 = pneg %p95
      %p142 = pneg %p92
      %s143 = smul.u32 2, %s18
      %p144 = scmp.lt.s32.totalorder %s17, 1
      %s145 = scalar_select %p144, %s17, 1
      %p146 = scmp.lt.s32.totalorder %s143, 1
      %s147 = scalar_select %p146, %s143, 1
      %s148 = smul.addr %s145, 2
      %s149 = sadd.s32 %s147, %s148
      %s150 = smul.addr %s149, 8
      %s151 = scalar_lea.vmem %s2, %s150
      %p152 = scmp.lt.s32.totalorder %s17, 1
      %s153 = scalar_select %p152, %s17, 1
      %s154 = smul.addr %s153, 32
      %s155 = smul.addr %s154, 8
      %s156 = scalar_lea.vmem %s0, %s155
      %s157 = smul.u32 2, %s18
      %p158 = scmp.lt.s32.totalorder %s17, 1
      %s159 = scalar_select %p158, %s17, 1
      %p160 = scmp.lt.s32.totalorder %s157, 1
      %s161 = scalar_select %p160, %s157, 1
      %s162 = smul.addr %s159, 2
      %s163 = sadd.s32 %s161, %s162
      %s164 = smul.addr %s163, 8
      %s165 = scalar_lea.vmem %s2, %s164
      %s166 = smul.u32 2, %s18
      %s167 = smul.u32 %s18, 16
      %s168 = sadd.s32 %s17, %s18
      %p169 = scmp.lt.s32.totalorder %s168, 0
      %s170 = ssub.s32 0, %s168
      %s171 = scalar_select %p169, %s170, %s168
      %s172 = sand.u32 %s171, 1
      %s173 = ssub.s32 0, %s172
      %s174 = scalar_select %p169, %s173, %s172
      %p175 = scmp.ne.s32.totalorder %s174, 0
      %p176 = scmp.lt.s32.totalorder %s174, 0
      %p177 = pnand %p176, %p175
      %p178 = pneg %p177
      %s179 = sadd.s32 %s174, 2
      %s180 = scalar_select %p178, %s179, %s174
      %s181 = scalar_lea.vmem %s156, %s167
      %v182 = vld [vmem:[%s181] sm:$0xff]
      %v183 = vld [vmem:[%s181 + $0x8] sm:$0xff]
      %v184 = vld [vmem:[%s181 + $0x10] sm:$0xff]
      %v185 = vld [vmem:[%s181 + $0x18] sm:$0xf]
      %v186 = vld [vmem:[%s181 + $0x20] sm:$0xff]
      %v187 = vld [vmem:[%s181 + $0x28] sm:$0xff]
      %v188 = vld [vmem:[%s181 + $0x30] sm:$0xff]
      %v189 = vld [vmem:[%s181 + $0x38] sm:$0xf]
      %v190 = vld [vmem:[%s181 + $0x40] sm:$0xff]
      %v191 = vld [vmem:[%s181 + $0x48] sm:$0xff]
      %v192 = vld [vmem:[%s181 + $0x50] sm:$0xff]
      %v193 = vld [vmem:[%s181 + $0x58] sm:$0xf]
      %v194 = vld [vmem:[%s181 + $0x60] sm:$0xff]
      %v195 = vld [vmem:[%s181 + $0x68] sm:$0xff]
      %v196 = vld [vmem:[%s181 + $0x70] sm:$0xff]
      %v197 = vld [vmem:[%s181 + $0x78] sm:$0xf]
      %v198 = vld [vmem:[%s181 + $0x80] sm:$0xff]
      %v199 = vld [vmem:[%s181 + $0x88] sm:$0xff]
      %v200 = vld [vmem:[%s181 + $0x90] sm:$0xff]
      %v201 = vld [vmem:[%s181 + $0x98] sm:$0xf]
      %v202 = vld [vmem:[%s181 + $0xa0] sm:$0xff]
      %v203 = vld [vmem:[%s181 + $0xa8] sm:$0xff]
      %v204 = vld [vmem:[%s181 + $0xb0] sm:$0xff]
      %v205 = vld [vmem:[%s181 + $0xb8] sm:$0xf]
      %v206 = vld [vmem:[%s181 + $0xc0] sm:$0xff]
      %v207 = vld [vmem:[%s181 + $0xc8] sm:$0xff]
      %v208 = vld [vmem:[%s181 + $0xd0] sm:$0xff]
      %v209 = vld [vmem:[%s181 + $0xd8] sm:$0xf]
      %v210 = vld [vmem:[%s181 + $0xe0] sm:$0xff]
      %v211 = vld [vmem:[%s181 + $0xe8] sm:$0xff]
      %v212 = vld [vmem:[%s181 + $0xf0] sm:$0xff]
      %v213 = vld [vmem:[%s181 + $0xf8] sm:$0xf]
      %v214 = vcombine.low %v182, %v190
      %v215 = vcombine.high %v182, %v190
      %v217 = vunpack.c.l.s4 1983009808
      %v218 = vunpack.c.0.s8 %v217
      %v219 = vlaneseq
      %v220 = vshrl.u32 %v219, 7
      %v221 = vsub.s32 %v218, %v220
      %v222 = vrot.slane %v214, %v221
      %v224 = vunpack.c.l.s4 1983009808
      %v225 = vunpack.c.0.s8 %v224
      %v226 = vlaneseq
      %v227 = vshrl.u32 %v226, 7
      %v228 = vsub.s32 %v225, %v227
      %v229 = vrot.slane %v215, %v228
      %v230 = vcombine.low %v186, %v194
      %v231 = vcombine.high %v186, %v194
      %v233 = vunpack.c.l.s4 1983009808
      %v234 = vunpack.c.0.s8 %v233
      %v235 = vlaneseq
      %v236 = vshrl.u32 %v235, 7
      %v237 = vsub.s32 %v234, %v236
      %v238 = vrot.slane %v230, %v237
      %v240 = vunpack.c.l.s4 1983009808
      %v241 = vunpack.c.0.s8 %v240
      %v242 = vlaneseq
      %v243 = vshrl.u32 %v242, 7
      %v244 = vsub.s32 %v241, %v243
      %v245 = vrot.slane %v231, %v244
      %v246 = vcombine.low %v198, %v206
      %v247 = vcombine.high %v198, %v206
      %v249 = vunpack.c.l.s4 1983009808
      %v250 = vunpack.c.0.s8 %v249
      %v251 = vlaneseq
      %v252 = vshrl.u32 %v251, 7
      %v253 = vsub.s32 %v250, %v252
      %v254 = vrot.slane %v246, %v253
      %v256 = vunpack.c.l.s4 1983009808
      %v257 = vunpack.c.0.s8 %v256
      %v258 = vlaneseq
      %v259 = vshrl.u32 %v258, 7
      %v260 = vsub.s32 %v257, %v259
      %v261 = vrot.slane %v247, %v260
      %v262 = vcombine.low %v202, %v210
      %v263 = vcombine.high %v202, %v210
      %v265 = vunpack.c.l.s4 1983009808
      %v266 = vunpack.c.0.s8 %v265
      %v267 = vlaneseq
      %v268 = vshrl.u32 %v267, 7
      %v269 = vsub.s32 %v266, %v268
      %v270 = vrot.slane %v262, %v269
      %v272 = vunpack.c.l.s4 1983009808
      %v273 = vunpack.c.0.s8 %v272
      %v274 = vlaneseq
      %v275 = vshrl.u32 %v274, 7
      %v276 = vsub.s32 %v273, %v275
      %v277 = vrot.slane %v263, %v276
      %v278 = vcombine.low %v222, %v238
      %v279 = vcombine.high %v222, %v238
      %v281 = vunpack.c.l.s4 1934713408
      %v282 = vunpack.c.0.s8 %v281
      %v283 = vlaneseq
      %v284 = vshrl.u32 %v283, 7
      %v285 = vsub.s32 %v282, %v284
      %v286 = vrot.slane %v278, %v285
      %v288 = vunpack.c.l.s4 1934713408
      %v289 = vunpack.c.0.s8 %v288
      %v290 = vlaneseq
      %v291 = vshrl.u32 %v290, 7
      %v292 = vsub.s32 %v289, %v291
      %v293 = vrot.slane %v279, %v292
      %v294 = vcombine.low %v229, %v245
      %v295 = vcombine.high %v229, %v245
      %v297 = vunpack.c.l.s4 1934713408
      %v298 = vunpack.c.0.s8 %v297
      %v299 = vlaneseq
      %v300 = vshrl.u32 %v299, 7
      %v301 = vsub.s32 %v298, %v300
      %v302 = vrot.slane %v294, %v301
      %v304 = vunpack.c.l.s4 1934713408
      %v305 = vunpack.c.0.s8 %v304
      %v306 = vlaneseq
      %v307 = vshrl.u32 %v306, 7
      %v308 = vsub.s32 %v305, %v307
      %v309 = vrot.slane %v295, %v308
      %v310 = vcombine.low %v254, %v270
      %v311 = vcombine.high %v254, %v270
      %v313 = vunpack.c.l.s4 1934713408
      %v314 = vunpack.c.0.s8 %v313
      %v315 = vlaneseq
      %v316 = vshrl.u32 %v315, 7
      %v317 = vsub.s32 %v314, %v316
      %v318 = vrot.slane %v310, %v317
      %v320 = vunpack.c.l.s4 1934713408
      %v321 = vunpack.c.0.s8 %v320
      %v322 = vlaneseq
      %v323 = vshrl.u32 %v322, 7
      %v324 = vsub.s32 %v321, %v323
      %v325 = vrot.slane %v311, %v324
      %v326 = vcombine.low %v261, %v277
      %v327 = vcombine.high %v261, %v277
      %v329 = vunpack.c.l.s4 1934713408
      %v330 = vunpack.c.0.s8 %v329
      %v331 = vlaneseq
      %v332 = vshrl.u32 %v331, 7
      %v333 = vsub.s32 %v330, %v332
      %v334 = vrot.slane %v326, %v333
      %v336 = vunpack.c.l.s4 1934713408
      %v337 = vunpack.c.0.s8 %v336
      %v338 = vlaneseq
      %v339 = vshrl.u32 %v338, 7
      %v340 = vsub.s32 %v337, %v339
      %v341 = vrot.slane %v327, %v340
      %v342 = vcombine.low %v286, %v318
      %v343 = vcombine.high %v286, %v318
      %v344 = vcombine.low %v293, %v325
      %v345 = vcombine.high %v293, %v325
      %v346 = vcombine.low %v302, %v334
      %v347 = vcombine.high %v302, %v334
      %v348 = vcombine.low %v309, %v341
      %v349 = vcombine.high %v309, %v341
      %v350 = vcombine.low %v183, %v191
      %v351 = vcombine.high %v183, %v191
      %v353 = vunpack.c.l.s4 1983009808
      %v354 = vunpack.c.0.s8 %v353
      %v355 = vlaneseq
      %v356 = vshrl.u32 %v355, 7
      %v357 = vsub.s32 %v354, %v356
      %v358 = vrot.slane %v350, %v357
      %v360 = vunpack.c.l.s4 1983009808
      %v361 = vunpack.c.0.s8 %v360
      %v362 = vlaneseq
      %v363 = vshrl.u32 %v362, 7
      %v364 = vsub.s32 %v361, %v363
      %v365 = vrot.slane %v351, %v364
      %v366 = vcombine.low %v187, %v195
      %v367 = vcombine.high %v187, %v195
      %v369 = vunpack.c.l.s4 1983009808
      %v370 = vunpack.c.0.s8 %v369
      %v371 = vlaneseq
      %v372 = vshrl.u32 %v371, 7
      %v373 = vsub.s32 %v370, %v372
      %v374 = vrot.slane %v366, %v373
      %v376 = vunpack.c.l.s4 1983009808
      %v377 = vunpack.c.0.s8 %v376
      %v378 = vlaneseq
      %v379 = vshrl.u32 %v378, 7
      %v380 = vsub.s32 %v377, %v379
      %v381 = vrot.slane %v367, %v380
      %v382 = vcombine.low %v199, %v207
      %v383 = vcombine.high %v199, %v207
      %v385 = vunpack.c.l.s4 1983009808
      %v386 = vunpack.c.0.s8 %v385
      %v387 = vlaneseq
      %v388 = vshrl.u32 %v387, 7
      %v389 = vsub.s32 %v386, %v388
      %v390 = vrot.slane %v382, %v389
      %v392 = vunpack.c.l.s4 1983009808
      %v393 = vunpack.c.0.s8 %v392
      %v394 = vlaneseq
      %v395 = vshrl.u32 %v394, 7
      %v396 = vsub.s32 %v393, %v395
      %v397 = vrot.slane %v383, %v396
      %v398 = vcombine.low %v203, %v211
      %v399 = vcombine.high %v203, %v211
      %v401 = vunpack.c.l.s4 1983009808
      %v402 = vunpack.c.0.s8 %v401
      %v403 = vlaneseq
      %v404 = vshrl.u32 %v403, 7
      %v405 = vsub.s32 %v402, %v404
      %v406 = vrot.slane %v398, %v405
      %v408 = vunpack.c.l.s4 1983009808
      %v409 = vunpack.c.0.s8 %v408
      %v410 = vlaneseq
      %v411 = vshrl.u32 %v410, 7
      %v412 = vsub.s32 %v409, %v411
      %v413 = vrot.slane %v399, %v412
      %v414 = vcombine.low %v358, %v374
      %v415 = vcombine.high %v358, %v374
      %v417 = vunpack.c.l.s4 1934713408
      %v418 = vunpack.c.0.s8 %v417
      %v419 = vlaneseq
      %v420 = vshrl.u32 %v419, 7
      %v421 = vsub.s32 %v418, %v420
      %v422 = vrot.slane %v414, %v421
      %v424 = vunpack.c.l.s4 1934713408
      %v425 = vunpack.c.0.s8 %v424
      %v426 = vlaneseq
      %v427 = vshrl.u32 %v426, 7
      %v428 = vsub.s32 %v425, %v427
      %v429 = vrot.slane %v415, %v428
      %v430 = vcombine.low %v365, %v381
      %v431 = vcombine.high %v365, %v381
      %v433 = vunpack.c.l.s4 1934713408
      %v434 = vunpack.c.0.s8 %v433
      %v435 = vlaneseq
      %v436 = vshrl.u32 %v435, 7
      %v437 = vsub.s32 %v434, %v436
      %v438 = vrot.slane %v430, %v437
      %v440 = vunpack.c.l.s4 1934713408
      %v441 = vunpack.c.0.s8 %v440
      %v442 = vlaneseq
      %v443 = vshrl.u32 %v442, 7
      %v444 = vsub.s32 %v441, %v443
      %v445 = vrot.slane %v431, %v444
      %v446 = vcombine.low %v390, %v406
      %v447 = vcombine.high %v390, %v406
      %v449 = vunpack.c.l.s4 1934713408
      %v450 = vunpack.c.0.s8 %v449
      %v451 = vlaneseq
      %v452 = vshrl.u32 %v451, 7
      %v453 = vsub.s32 %v450, %v452
      %v454 = vrot.slane %v446, %v453
      %v456 = vunpack.c.l.s4 1934713408
      %v457 = vunpack.c.0.s8 %v456
      %v458 = vlaneseq
      %v459 = vshrl.u32 %v458, 7
      %v460 = vsub.s32 %v457, %v459
      %v461 = vrot.slane %v447, %v460
      %v462 = vcombine.low %v397, %v413
      %v463 = vcombine.high %v397, %v413
      %v465 = vunpack.c.l.s4 1934713408
      %v466 = vunpack.c.0.s8 %v465
      %v467 = vlaneseq
      %v468 = vshrl.u32 %v467, 7
      %v469 = vsub.s32 %v466, %v468
      %v470 = vrot.slane %v462, %v469
      %v472 = vunpack.c.l.s4 1934713408
      %v473 = vunpack.c.0.s8 %v472
      %v474 = vlaneseq
      %v475 = vshrl.u32 %v474, 7
      %v476 = vsub.s32 %v473, %v475
      %v477 = vrot.slane %v463, %v476
      %v478 = vcombine.low %v422, %v454
      %v479 = vcombine.high %v422, %v454
      %v480 = vcombine.low %v429, %v461
      %v481 = vcombine.high %v429, %v461
      %v482 = vcombine.low %v438, %v470
      %v483 = vcombine.high %v438, %v470
      %v484 = vcombine.low %v445, %v477
      %v485 = vcombine.high %v445, %v477
      %v486 = vcombine.low %v184, %v192
      %v487 = vcombine.high %v184, %v192
      %v489 = vunpack.c.l.s4 1983009808
      %v490 = vunpack.c.0.s8 %v489
      %v491 = vlaneseq
      %v492 = vshrl.u32 %v491, 7
      %v493 = vsub.s32 %v490, %v492
      %v494 = vrot.slane %v486, %v493
      %v496 = vunpack.c.l.s4 1983009808
      %v497 = vunpack.c.0.s8 %v496
      %v498 = vlaneseq
      %v499 = vshrl.u32 %v498, 7
      %v500 = vsub.s32 %v497, %v499
      %v501 = vrot.slane %v487, %v500
      %v502 = vcombine.low %v188, %v196
      %v503 = vcombine.high %v188, %v196
      %v505 = vunpack.c.l.s4 1983009808
      %v506 = vunpack.c.0.s8 %v505
      %v507 = vlaneseq
      %v508 = vshrl.u32 %v507, 7
      %v509 = vsub.s32 %v506, %v508
      %v510 = vrot.slane %v502, %v509
      %v512 = vunpack.c.l.s4 1983009808
      %v513 = vunpack.c.0.s8 %v512
      %v514 = vlaneseq
      %v515 = vshrl.u32 %v514, 7
      %v516 = vsub.s32 %v513, %v515
      %v517 = vrot.slane %v503, %v516
      %v518 = vcombine.low %v200, %v208
      %v519 = vcombine.high %v200, %v208
      %v521 = vunpack.c.l.s4 1983009808
      %v522 = vunpack.c.0.s8 %v521
      %v523 = vlaneseq
      %v524 = vshrl.u32 %v523, 7
      %v525 = vsub.s32 %v522, %v524
      %v526 = vrot.slane %v518, %v525
      %v528 = vunpack.c.l.s4 1983009808
      %v529 = vunpack.c.0.s8 %v528
      %v530 = vlaneseq
      %v531 = vshrl.u32 %v530, 7
      %v532 = vsub.s32 %v529, %v531
      %v533 = vrot.slane %v519, %v532
      %v534 = vcombine.low %v204, %v212
      %v535 = vcombine.high %v204, %v212
      %v537 = vunpack.c.l.s4 1983009808
      %v538 = vunpack.c.0.s8 %v537
      %v539 = vlaneseq
      %v540 = vshrl.u32 %v539, 7
      %v541 = vsub.s32 %v538, %v540
      %v542 = vrot.slane %v534, %v541
      %v544 = vunpack.c.l.s4 1983009808
      %v545 = vunpack.c.0.s8 %v544
      %v546 = vlaneseq
      %v547 = vshrl.u32 %v546, 7
      %v548 = vsub.s32 %v545, %v547
      %v549 = vrot.slane %v535, %v548
      %v550 = vcombine.low %v494, %v510
      %v551 = vcombine.high %v494, %v510
      %v553 = vunpack.c.l.s4 1934713408
      %v554 = vunpack.c.0.s8 %v553
      %v555 = vlaneseq
      %v556 = vshrl.u32 %v555, 7
      %v557 = vsub.s32 %v554, %v556
      %v558 = vrot.slane %v550, %v557
      %v560 = vunpack.c.l.s4 1934713408
      %v561 = vunpack.c.0.s8 %v560
      %v562 = vlaneseq
      %v563 = vshrl.u32 %v562, 7
      %v564 = vsub.s32 %v561, %v563
      %v565 = vrot.slane %v551, %v564
      %v566 = vcombine.low %v501, %v517
      %v567 = vcombine.high %v501, %v517
      %v569 = vunpack.c.l.s4 1934713408
      %v570 = vunpack.c.0.s8 %v569
      %v571 = vlaneseq
      %v572 = vshrl.u32 %v571, 7
      %v573 = vsub.s32 %v570, %v572
      %v574 = vrot.slane %v566, %v573
      %v576 = vunpack.c.l.s4 1934713408
      %v577 = vunpack.c.0.s8 %v576
      %v578 = vlaneseq
      %v579 = vshrl.u32 %v578, 7
      %v580 = vsub.s32 %v577, %v579
      %v581 = vrot.slane %v567, %v580
      %v582 = vcombine.low %v526, %v542
      %v583 = vcombine.high %v526, %v542
      %v585 = vunpack.c.l.s4 1934713408
      %v586 = vunpack.c.0.s8 %v585
      %v587 = vlaneseq
      %v588 = vshrl.u32 %v587, 7
      %v589 = vsub.s32 %v586, %v588
      %v590 = vrot.slane %v582, %v589
      %v592 = vunpack.c.l.s4 1934713408
      %v593 = vunpack.c.0.s8 %v592
      %v594 = vlaneseq
      %v595 = vshrl.u32 %v594, 7
      %v596 = vsub.s32 %v593, %v595
      %v597 = vrot.slane %v583, %v596
      %v598 = vcombine.low %v533, %v549
      %v599 = vcombine.high %v533, %v549
      %v601 = vunpack.c.l.s4 1934713408
      %v602 = vunpack.c.0.s8 %v601
      %v603 = vlaneseq
      %v604 = vshrl.u32 %v603, 7
      %v605 = vsub.s32 %v602, %v604
      %v606 = vrot.slane %v598, %v605
      %v608 = vunpack.c.l.s4 1934713408
      %v609 = vunpack.c.0.s8 %v608
      %v610 = vlaneseq
      %v611 = vshrl.u32 %v610, 7
      %v612 = vsub.s32 %v609, %v611
      %v613 = vrot.slane %v599, %v612
      %v614 = vcombine.low %v558, %v590
      %v615 = vcombine.high %v558, %v590
      %v616 = vcombine.low %v565, %v597
      %v617 = vcombine.high %v565, %v597
      %v618 = vcombine.low %v574, %v606
      %v619 = vcombine.high %v574, %v606
      %v620 = vcombine.low %v581, %v613
      %v621 = vcombine.high %v581, %v613
      %v622 = vcombine.low %v185, %v193
      %v624 = vunpack.c.l.s4 1983009808
      %v625 = vunpack.c.0.s8 %v624
      %v626 = vlaneseq
      %v627 = vshrl.u32 %v626, 7
      %v628 = vsub.s32 %v625, %v627
      %v629 = vrot.slane %v622, %v628
      %v630 = vcombine.low %v189, %v197
      %v632 = vunpack.c.l.s4 1983009808
      %v633 = vunpack.c.0.s8 %v632
      %v634 = vlaneseq
      %v635 = vshrl.u32 %v634, 7
      %v636 = vsub.s32 %v633, %v635
      %v637 = vrot.slane %v630, %v636
      %v638 = vcombine.low %v201, %v209
      %v640 = vunpack.c.l.s4 1983009808
      %v641 = vunpack.c.0.s8 %v640
      %v642 = vlaneseq
      %v643 = vshrl.u32 %v642, 7
      %v644 = vsub.s32 %v641, %v643
      %v645 = vrot.slane %v638, %v644
      %v646 = vcombine.low %v205, %v213
      %v648 = vunpack.c.l.s4 1983009808
      %v649 = vunpack.c.0.s8 %v648
      %v650 = vlaneseq
      %v651 = vshrl.u32 %v650, 7
      %v652 = vsub.s32 %v649, %v651
      %v653 = vrot.slane %v646, %v652
      %v654 = vcombine.low %v629, %v637
      %v655 = vcombine.high %v629, %v637
      %v657 = vunpack.c.l.s4 1934713408
      %v658 = vunpack.c.0.s8 %v657
      %v659 = vlaneseq
      %v660 = vshrl.u32 %v659, 7
      %v661 = vsub.s32 %v658, %v660
      %v662 = vrot.slane %v654, %v661
      %v664 = vunpack.c.l.s4 1934713408
      %v665 = vunpack.c.0.s8 %v664
      %v666 = vlaneseq
      %v667 = vshrl.u32 %v666, 7
      %v668 = vsub.s32 %v665, %v667
      %v669 = vrot.slane %v655, %v668
      %v670 = vcombine.low %v645, %v653
      %v671 = vcombine.high %v645, %v653
      %v673 = vunpack.c.l.s4 1934713408
      %v674 = vunpack.c.0.s8 %v673
      %v675 = vlaneseq
      %v676 = vshrl.u32 %v675, 7
      %v677 = vsub.s32 %v674, %v676
      %v678 = vrot.slane %v670, %v677
      %v680 = vunpack.c.l.s4 1934713408
      %v681 = vunpack.c.0.s8 %v680
      %v682 = vlaneseq
      %v683 = vshrl.u32 %v682, 7
      %v684 = vsub.s32 %v681, %v683
      %v685 = vrot.slane %v671, %v684
      %v686 = vcombine.low %v662, %v678
      %v687 = vcombine.high %v662, %v678
      %v688 = vcombine.low %v669, %v685
      %v689 = vcombine.high %v669, %v685
      %691 = vrot.lane.b32.xlu0 %v343, 16
      %v692 = vpop.permute.xlu0 %691
      %695 = vrot.lane.b32.xlu0 %v344, 32
      %v696 = vpop.permute.xlu0 %695
      %699 = vrot.lane.b32.xlu0 %v345, 48
      %v700 = vpop.permute.xlu0 %699
      %703 = vrot.lane.b32.xlu0 %v346, 64
      %v704 = vpop.permute.xlu0 %703
      %707 = vrot.lane.b32.xlu0 %v347, 80
      %v708 = vpop.permute.xlu0 %707
      %711 = vrot.lane.b32.xlu0 %v348, 96
      %v712 = vpop.permute.xlu0 %711
      %715 = vrot.lane.b32.xlu0 %v349, 112
      %v716 = vpop.permute.xlu0 %715
      %719 = vrot.lane.b32.xlu0 %v479, 16
      %v720 = vpop.permute.xlu0 %719
      %723 = vrot.lane.b32.xlu0 %v480, 32
      %v724 = vpop.permute.xlu0 %723
      %727 = vrot.lane.b32.xlu0 %v481, 48
      %v728 = vpop.permute.xlu0 %727
      %731 = vrot.lane.b32.xlu0 %v482, 64
      %v732 = vpop.permute.xlu0 %731
      %735 = vrot.lane.b32.xlu0 %v483, 80
      %v736 = vpop.permute.xlu0 %735
      %739 = vrot.lane.b32.xlu0 %v484, 96
      %v740 = vpop.permute.xlu0 %739
      %743 = vrot.lane.b32.xlu0 %v485, 112
      %v744 = vpop.permute.xlu0 %743
      %747 = vrot.lane.b32.xlu0 %v615, 16
      %v748 = vpop.permute.xlu0 %747
      %751 = vrot.lane.b32.xlu0 %v616, 32
      %v752 = vpop.permute.xlu0 %751
      %755 = vrot.lane.b32.xlu0 %v617, 48
      %v756 = vpop.permute.xlu0 %755
      %759 = vrot.lane.b32.xlu0 %v618, 64
      %v760 = vpop.permute.xlu0 %759
      %763 = vrot.lane.b32.xlu0 %v619, 80
      %v764 = vpop.permute.xlu0 %763
      %767 = vrot.lane.b32.xlu0 %v620, 96
      %v768 = vpop.permute.xlu0 %767
      %771 = vrot.lane.b32.xlu0 %v621, 112
      %v772 = vpop.permute.xlu0 %771
      %775 = vrot.lane.b32.xlu0 %v687, 16
      %v776 = vpop.permute.xlu0 %775
      %779 = vrot.lane.b32.xlu0 %v688, 32
      %v780 = vpop.permute.xlu0 %779
      %783 = vrot.lane.b32.xlu0 %v689, 48
      %v784 = vpop.permute.xlu0 %783
      %vm786 = vcmask 130048
      %v787 = vsel %vm786, %v342, %v692
      %vm788 = vcmask 261120
      %v789 = vsel %vm788, %v787, %v696
      %vm790 = vcmask 392192
      %v791 = vsel %vm790, %v789, %v700
      %vm792 = vcmask 523264
      %v793 = vsel %vm792, %v791, %v704
      %vm794 = vcmask 654336
      %v795 = vsel %vm794, %v793, %v708
      %vm796 = vcmask 785408
      %v797 = vsel %vm796, %v795, %v712
      %vm798 = vcmask 916480
      %v799 = vsel %vm798, %v797, %v716
      %v800 = vsel %vm786, %v478, %v720
      %v801 = vsel %vm788, %v800, %v724
      %v802 = vsel %vm790, %v801, %v728
      %v803 = vsel %vm792, %v802, %v732
      %v804 = vsel %vm794, %v803, %v736
      %v805 = vsel %vm796, %v804, %v740
      %v806 = vsel %vm798, %v805, %v744
      %v807 = vsel %vm786, %v614, %v748
      %v808 = vsel %vm788, %v807, %v752
      %v809 = vsel %vm790, %v808, %v756
      %v810 = vsel %vm792, %v809, %v760
      %v811 = vsel %vm794, %v810, %v764
      %v812 = vsel %vm796, %v811, %v768
      %v813 = vsel %vm798, %v812, %v772
      %v814 = vsel %vm786, %v686, %v776
      %v815 = vsel %vm788, %v814, %v780
      %v816 = vsel %vm790, %v815, %v784
      %v817 = vlaneseq
      %v818 = vand.u32 %v817, 127
      %v819 = vadd.s32 %v818, 128
      %vm820 = vcmp.lt.s32.totalorder %v818, 0
      %v821 = vsub.s32 0, %v818
      %v822 = vsel %vm820, %v821, %v818
      %v823 = vshrl.u32 %v822, 4
      %v824 = vand.u32 %v822, 15
      %v825 = vsub.s32 0, %v824
      %v826 = vsel %vm820, %v825, %v824
      %vm827 = vcmp.lt.s32.totalorder %v819, 0
      %v828 = vsub.s32 0, %v819
      %v829 = vsel %vm827, %v828, %v819
      %v830 = vshrl.u32 %v829, 4
      %v831 = vand.u32 %v829, 15
      %v832 = vsub.s32 0, %v831
      %v833 = vsel %vm827, %v832, %v831
      %vm834 = vcmp.ne.s32.totalorder %v826, 0
      %vm835 = vcmp.ne.s32.totalorder %v833, 0
      %vm836 = vcmp.lt.s32.totalorder %v826, 0
      %vm837 = vcmp.lt.s32.totalorder %v833, 0
      %vm838 = vmand %vm836, %vm834
      %vm839 = vmand %vm837, %vm835
      %v840 = vadd.s32 %v826, 16
      %v841 = vadd.s32 %v833, 16
      %v842 = vsel %vm838, %v840, %v826
      %v843 = vsel %vm839, %v841, %v833
      %vm844 = vcmp.ge.s32.totalorder %v842, 5
      %vm845 = vcmp.ge.s32.totalorder %v843, 5
      %v846 = vsel %vm844, 1, 0
      %v847 = vsel %vm845, 1, 0
      %vm848 = vcmp.eq.s32.totalorder %v846, 1
      %vm849 = vcmp.eq.s32.totalorder %v847, 1
      %853 = vrot.lane.b32.xlu0 %v799, 117
      %v854 = vpop.permute.xlu0 %853
      %855 = vrot.lane.b32.xlu0 %v806, 117
      %v856 = vpop.permute.xlu0 %855
      %857 = vrot.lane.b32.xlu0 %v813, 117
      %v858 = vpop.permute.xlu0 %857
      %vm859 = vcmask 957440
      %v860 = vsel %vm859, %v854, %v856
      %v861 = vsel %vm859, %v856, %v858
      %v864 = vsel %vm848, %v860, 0.0
      %v865 = vsel %vm849, %v861, 0.0
      %s866 = smul.u32 %s180, 50
      %s867 = smul.addr %s866, 8
      %s868 = scalar_lea.vmem [#allocation2], %s867
      %869 = vst [vmem:[%s868] sm:$0xff] %v864
      %870 = vst [vmem:[%s868 + $0x8] sm:$0xff] %v865
      %871 = vrot.lane.b32.xlu0 %v799, 112
      %v872 = vpop.permute.xlu0 %871
      %873 = vrot.lane.b32.xlu0 %v806, 112
      %v874 = vpop.permute.xlu0 %873
      %875 = vrot.lane.b32.xlu0 %v813, 112
      %v876 = vpop.permute.xlu0 %875
      %v877 = vsel %vm798, %v872, %v874
      %v878 = vsel %vm798, %v874, %v876
      %881 = vst [vmem:[%s868 + $0x10] sm:$0xff] %v877
      %882 = vst [vmem:[%s868 + $0x18] sm:$0xff] %v878
      %vm883 = vcmp.lt.s32.totalorder %v842, 11
      %vm884 = vcmp.lt.s32.totalorder %v843, 11
      %v885 = vsel %vm883, 1, 0
      %v886 = vsel %vm884, 1, 0
      %vm887 = vcmp.eq.s32.totalorder %v885, 1
      %vm888 = vcmp.eq.s32.totalorder %v886, 1
      %889 = vrot.lane.b32.xlu0 %v799, 107
      %v890 = vpop.permute.xlu0 %889
      %891 = vrot.lane.b32.xlu0 %v806, 107
      %v892 = vpop.permute.xlu0 %891
      %893 = vrot.lane.b32.xlu0 %v813, 107
      %v894 = vpop.permute.xlu0 %893
      %vm895 = vcmask 875520
      %v896 = vsel %vm895, %v890, %v892
      %v897 = vsel %vm895, %v892, %v894
      %v900 = vsel %vm887, %v896, 0.0
      %v901 = vsel %vm888, %v897, 0.0
      %902 = vst [vmem:[%s868 + $0x20] sm:$0xff] %v900
      %903 = vst [vmem:[%s868 + $0x28] sm:$0xff] %v901
      %vm904 = vcmp.ge.s32.totalorder %v842, 3
      %vm905 = vcmp.ge.s32.totalorder %v843, 3
      %v906 = vsel %vm904, 1, 0
      %v907 = vsel %vm905, 1, 0
      %vm908 = vcmp.eq.s32.totalorder %v906, 1
      %vm909 = vcmp.eq.s32.totalorder %v907, 1
      %910 = vrot.lane.b32.xlu0 %v799, 83
      %v911 = vpop.permute.xlu0 %910
      %912 = vrot.lane.b32.xlu0 %v806, 83
      %v913 = vpop.permute.xlu0 %912
      %914 = vrot.lane.b32.xlu0 %v813, 83
      %v915 = vpop.permute.xlu0 %914
      %vm916 = vcmask 678912
      %v917 = vsel %vm916, %v911, %v913
      %v918 = vsel %vm916, %v913, %v915
      %v921 = vsel %vm908, %v917, 0.0
      %v922 = vsel %vm909, %v918, 0.0
      %923 = vst [vmem:[%s868 + $0x30] sm:$0xff] %v921
      %924 = vst [vmem:[%s868 + $0x38] sm:$0xff] %v922
      %925 = vrot.lane.b32.xlu0 %v799, 80
      %v926 = vpop.permute.xlu0 %925
      %927 = vrot.lane.b32.xlu0 %v806, 80
      %v928 = vpop.permute.xlu0 %927
      %929 = vrot.lane.b32.xlu0 %v813, 80
      %v930 = vpop.permute.xlu0 %929
      %v931 = vsel %vm794, %v926, %v928
      %v932 = vsel %vm794, %v928, %v930
      %935 = vst [vmem:[%s868 + $0x40] sm:$0xff] %v931
      %936 = vst [vmem:[%s868 + $0x48] sm:$0xff] %v932
      %vm937 = vcmp.lt.s32.totalorder %v842, 13
      %vm938 = vcmp.lt.s32.totalorder %v843, 13
      %v939 = vsel %vm937, 1, 0
      %v940 = vsel %vm938, 1, 0
      %vm941 = vcmp.eq.s32.totalorder %v939, 1
      %vm942 = vcmp.eq.s32.totalorder %v940, 1
      %943 = vrot.lane.b32.xlu0 %v799, 77
      %v944 = vpop.permute.xlu0 %943
      %945 = vrot.lane.b32.xlu0 %v806, 77
      %v946 = vpop.permute.xlu0 %945
      %947 = vrot.lane.b32.xlu0 %v813, 77
      %v948 = vpop.permute.xlu0 %947
      %vm949 = vcmask 629760
      %v950 = vsel %vm949, %v944, %v946
      %v951 = vsel %vm949, %v946, %v948
      %v954 = vsel %vm941, %v950, 0.0
      %v955 = vsel %vm942, %v951, 0.0
      %956 = vst [vmem:[%s868 + $0x50] sm:$0xff] %v954
      %957 = vst [vmem:[%s868 + $0x58] sm:$0xff] %v955
      %vm958 = vcmp.ge.s32.totalorder %v842, 1
      %vm959 = vcmp.ge.s32.totalorder %v843, 1
      %v960 = vsel %vm958, 1, 0
      %v961 = vsel %vm959, 1, 0
      %vm962 = vcmp.eq.s32.totalorder %v960, 1
      %vm963 = vcmp.eq.s32.totalorder %v961, 1
      %964 = vrot.lane.b32.xlu0 %v799, 49
      %v965 = vpop.permute.xlu0 %964
      %966 = vrot.lane.b32.xlu0 %v806, 49
      %v967 = vpop.permute.xlu0 %966
      %968 = vrot.lane.b32.xlu0 %v813, 49
      %v969 = vpop.permute.xlu0 %968
      %vm970 = vcmask 400384
      %v971 = vsel %vm970, %v965, %v967
      %v972 = vsel %vm970, %v967, %v969
      %v975 = vsel %vm962, %v971, 0.0
      %v976 = vsel %vm963, %v972, 0.0
      %977 = vst [vmem:[%s868 + $0x60] sm:$0xff] %v975
      %978 = vst [vmem:[%s868 + $0x68] sm:$0xff] %v976
      %979 = vrot.lane.b32.xlu0 %v799, 48
      %v980 = vpop.permute.xlu0 %979
      %981 = vrot.lane.b32.xlu0 %v806, 48
      %v982 = vpop.permute.xlu0 %981
      %983 = vrot.lane.b32.xlu0 %v813, 48
      %v984 = vpop.permute.xlu0 %983
      %v985 = vsel %vm790, %v980, %v982
      %v986 = vsel %vm790, %v982, %v984
      %989 = vst [vmem:[%s868 + $0x70] sm:$0xff] %v985
      %990 = vst [vmem:[%s868 + $0x78] sm:$0xff] %v986
      %vm991 = vcmp.lt.s32.totalorder %v842, 15
      %vm992 = vcmp.lt.s32.totalorder %v843, 15
      %v993 = vsel %vm991, 1, 0
      %v994 = vsel %vm992, 1, 0
      %vm995 = vcmp.eq.s32.totalorder %v993, 1
      %vm996 = vcmp.eq.s32.totalorder %v994, 1
      %997 = vrot.lane.b32.xlu0 %v799, 47
      %v998 = vpop.permute.xlu0 %997
      %999 = vrot.lane.b32.xlu0 %v806, 47
      %v1000 = vpop.permute.xlu0 %999
      %1001 = vrot.lane.b32.xlu0 %v813, 47
      %v1002 = vpop.permute.xlu0 %1001
      %vm1003 = vcmask 384000
      %v1004 = vsel %vm1003, %v998, %v1000
      %v1005 = vsel %vm1003, %v1000, %v1002
      %v1008 = vsel %vm995, %v1004, 0.0
      %v1009 = vsel %vm996, %v1005, 0.0
      %1010 = vst [vmem:[%s868 + $0x80] sm:$0xff] %v1008
      %1011 = vst [vmem:[%s868 + $0x88] sm:$0xff] %v1009
      %1012 = vrot.lane.b32.xlu0 %v799, 37
      %v1013 = vpop.permute.xlu0 %1012
      %1014 = vrot.lane.b32.xlu0 %v806, 37
      %v1015 = vpop.permute.xlu0 %1014
      %1016 = vrot.lane.b32.xlu0 %v813, 37
      %v1017 = vpop.permute.xlu0 %1016
      %vm1018 = vcmask 302080
      %v1019 = vsel %vm1018, %v1013, %v1015
      %v1020 = vsel %vm1018, %v1015, %v1017
      %v1023 = vsel %vm848, %v1019, 0.0
      %v1024 = vsel %vm849, %v1020, 0.0
      %1025 = vst [vmem:[%s868 + $0x90] sm:$0xff] %v1023
      %1026 = vst [vmem:[%s868 + $0x98] sm:$0xff] %v1024
      %1027 = vrot.lane.b32.xlu0 %v799, 35
      %v1028 = vpop.permute.xlu0 %1027
      %1029 = vrot.lane.b32.xlu0 %v806, 35
      %v1030 = vpop.permute.xlu0 %1029
      %1031 = vrot.lane.b32.xlu0 %v813, 35
      %v1032 = vpop.permute.xlu0 %1031
      %vm1033 = vcmask 285696
      %v1034 = vsel %vm1033, %v1028, %v1030
      %v1035 = vsel %vm1033, %v1030, %v1032
      %v1038 = vsel %vm908, %v1034, 0.0
      %v1039 = vsel %vm909, %v1035, 0.0
      %1040 = vst [vmem:[%s868 + $0xa0] sm:$0xff] %v1038
      %1041 = vst [vmem:[%s868 + $0xa8] sm:$0xff] %v1039
      %1042 = vrot.lane.b32.xlu0 %v799, 33
      %v1043 = vpop.permute.xlu0 %1042
      %1044 = vrot.lane.b32.xlu0 %v806, 33
      %v1045 = vpop.permute.xlu0 %1044
      %1046 = vrot.lane.b32.xlu0 %v813, 33
      %v1047 = vpop.permute.xlu0 %1046
      %vm1048 = vcmask 269312
      %v1049 = vsel %vm1048, %v1043, %v1045
      %v1050 = vsel %vm1048, %v1045, %v1047
      %v1053 = vsel %vm962, %v1049, 0.0
      %v1054 = vsel %vm963, %v1050, 0.0
      %1055 = vst [vmem:[%s868 + $0xb0] sm:$0xff] %v1053
      %1056 = vst [vmem:[%s868 + $0xb8] sm:$0xff] %v1054
      %1057 = vrot.lane.b32.xlu0 %v799, 32
      %v1058 = vpop.permute.xlu0 %1057
      %1059 = vrot.lane.b32.xlu0 %v806, 32
      %v1060 = vpop.permute.xlu0 %1059
      %1061 = vrot.lane.b32.xlu0 %v813, 32
      %v1062 = vpop.permute.xlu0 %1061
      %v1063 = vsel %vm788, %v1058, %v1060
      %v1064 = vsel %vm788, %v1060, %v1062
      %1067 = vst [vmem:[%s868 + $0xc0] sm:$0xff] %v1063
      %1068 = vst [vmem:[%s868 + $0xc8] sm:$0xff] %v1064
      %1069 = vrot.lane.b32.xlu0 %v799, 31
      %v1070 = vpop.permute.xlu0 %1069
      %1071 = vrot.lane.b32.xlu0 %v806, 31
      %v1072 = vpop.permute.xlu0 %1071
      %1073 = vrot.lane.b32.xlu0 %v813, 31
      %v1074 = vpop.permute.xlu0 %1073
      %vm1075 = vcmask 252928
      %v1076 = vsel %vm1075, %v1070, %v1072
      %v1077 = vsel %vm1075, %v1072, %v1074
      %v1080 = vsel %vm995, %v1076, 0.0
      %v1081 = vsel %vm996, %v1077, 0.0
      %1082 = vst [vmem:[%s868 + $0xd0] sm:$0xff] %v1080
      %1083 = vst [vmem:[%s868 + $0xd8] sm:$0xff] %v1081
      %1084 = vrot.lane.b32.xlu0 %v799, 29
      %v1085 = vpop.permute.xlu0 %1084
      %1086 = vrot.lane.b32.xlu0 %v806, 29
      %v1087 = vpop.permute.xlu0 %1086
      %1088 = vrot.lane.b32.xlu0 %v813, 29
      %v1089 = vpop.permute.xlu0 %1088
      %vm1090 = vcmask 236544
      %v1091 = vsel %vm1090, %v1085, %v1087
      %v1092 = vsel %vm1090, %v1087, %v1089
      %v1095 = vsel %vm941, %v1091, 0.0
      %v1096 = vsel %vm942, %v1092, 0.0
      %1097 = vst [vmem:[%s868 + $0xe0] sm:$0xff] %v1095
      %1098 = vst [vmem:[%s868 + $0xe8] sm:$0xff] %v1096
      %1099 = vrot.lane.b32.xlu0 %v799, 27
      %v1100 = vpop.permute.xlu0 %1099
      %1101 = vrot.lane.b32.xlu0 %v806, 27
      %v1102 = vpop.permute.xlu0 %1101
      %1103 = vrot.lane.b32.xlu0 %v813, 27
      %v1104 = vpop.permute.xlu0 %1103
      %vm1105 = vcmask 220160
      %v1106 = vsel %vm1105, %v1100, %v1102
      %v1107 = vsel %vm1105, %v1102, %v1104
      %v1110 = vsel %vm887, %v1106, 0.0
      %v1111 = vsel %vm888, %v1107, 0.0
      %1112 = vst [vmem:[%s868 + $0xf0] sm:$0xff] %v1110
      %1113 = vst [vmem:[%s868 + $0xf8] sm:$0xff] %v1111
      %1114 = vrot.lane.b32.xlu0 %v799, 17
      %v1115 = vpop.permute.xlu0 %1114
      %1116 = vrot.lane.b32.xlu0 %v806, 17
      %v1117 = vpop.permute.xlu0 %1116
      %1118 = vrot.lane.b32.xlu0 %v813, 17
      %v1119 = vpop.permute.xlu0 %1118
      %vm1120 = vcmask 138240
      %v1121 = vsel %vm1120, %v1115, %v1117
      %v1122 = vsel %vm1120, %v1117, %v1119
      %v1125 = vsel %vm962, %v1121, 0.0
      %v1126 = vsel %vm963, %v1122, 0.0
      %1127 = vst [vmem:[%s868 + $0x100] sm:$0xff] %v1125
      %1128 = vst [vmem:[%s868 + $0x108] sm:$0xff] %v1126
      %1129 = vrot.lane.b32.xlu0 %v799, 16
      %v1130 = vpop.permute.xlu0 %1129
      %1131 = vrot.lane.b32.xlu0 %v806, 16
      %v1132 = vpop.permute.xlu0 %1131
      %1133 = vrot.lane.b32.xlu0 %v813, 16
      %v1134 = vpop.permute.xlu0 %1133
      %v1135 = vsel %vm786, %v1130, %v1132
      %v1136 = vsel %vm786, %v1132, %v1134
      %1139 = vst [vmem:[%s868 + $0x110] sm:$0xff] %v1135
      %1140 = vst [vmem:[%s868 + $0x118] sm:$0xff] %v1136
      %1141 = vrot.lane.b32.xlu0 %v799, 15
      %v1142 = vpop.permute.xlu0 %1141
      %1143 = vrot.lane.b32.xlu0 %v806, 15
      %v1144 = vpop.permute.xlu0 %1143
      %1145 = vrot.lane.b32.xlu0 %v813, 15
      %v1146 = vpop.permute.xlu0 %1145
      %vm1147 = vcmask 121856
      %v1148 = vsel %vm1147, %v1142, %v1144
      %v1149 = vsel %vm1147, %v1144, %v1146
      %v1152 = vsel %vm995, %v1148, 0.0
      %v1153 = vsel %vm996, %v1149, 0.0
      %1154 = vst [vmem:[%s868 + $0x120] sm:$0xff] %v1152
      %1155 = vst [vmem:[%s868 + $0x128] sm:$0xff] %v1153
      %1157 = vrot.lane.b32.xlu0 %v806, 115
      %v1158 = vpop.permute.xlu0 %1157
      %1159 = vrot.lane.b32.xlu0 %v813, 115
      %v1160 = vpop.permute.xlu0 %1159
      %1161 = vrot.lane.b32.xlu0 %v816, 115
      %v1162 = vpop.permute.xlu0 %1161
      %vm1163 = vcmask 941056
      %v1164 = vsel %vm1163, %v1158, %v1160
      %v1165 = vsel %vm1163, %v1160, %v1162
      %v1168 = vsel %vm908, %v1164, 0.0
      %v1169 = vsel %vm909, %v1165, 0.0
      %1170 = vst [vmem:[%s868 + $0x130] sm:$0xff] %v1168
      %1171 = vst [vmem:[%s868 + $0x138] sm:$0xff] %v1169
      %1172 = vrot.lane.b32.xlu0 %v816, 112
      %v1173 = vpop.permute.xlu0 %1172
      %v1174 = vsel %vm798, %v876, %v1173
      %1176 = vst [vmem:[%s868 + $0x140] sm:$0xff] %v878
      %1177 = vst [vmem:[%s868 + $0x148] sm:$0xff] %v1174
      %1178 = vrot.lane.b32.xlu0 %v806, 109
      %v1179 = vpop.permute.xlu0 %1178
      %1180 = vrot.lane.b32.xlu0 %v813, 109
      %v1181 = vpop.permute.xlu0 %1180
      %1182 = vrot.lane.b32.xlu0 %v816, 109
      %v1183 = vpop.permute.xlu0 %1182
      %vm1184 = vcmask 891904
      %v1185 = vsel %vm1184, %v1179, %v1181
      %v1186 = vsel %vm1184, %v1181, %v1183
      %v1189 = vsel %vm941, %v1185, 0.0
      %v1190 = vsel %vm942, %v1186, 0.0
      %1191 = vst [vmem:[%s868 + $0x150] sm:$0xff] %v1189
      %1192 = vst [vmem:[%s868 + $0x158] sm:$0xff] %v1190
      %1193 = vrot.lane.b32.xlu0 %v806, 85
      %v1194 = vpop.permute.xlu0 %1193
      %1195 = vrot.lane.b32.xlu0 %v813, 85
      %v1196 = vpop.permute.xlu0 %1195
      %1197 = vrot.lane.b32.xlu0 %v816, 85
      %v1198 = vpop.permute.xlu0 %1197
      %vm1199 = vcmask 695296
      %v1200 = vsel %vm1199, %v1194, %v1196
      %v1201 = vsel %vm1199, %v1196, %v1198
      %v1204 = vsel %vm848, %v1200, 0.0
      %v1205 = vsel %vm849, %v1201, 0.0
      %1206 = vst [vmem:[%s868 + $0x160] sm:$0xff] %v1204
      %1207 = vst [vmem:[%s868 + $0x168] sm:$0xff] %v1205
      %1208 = vrot.lane.b32.xlu0 %v816, 80
      %v1209 = vpop.permute.xlu0 %1208
      %v1210 = vsel %vm794, %v930, %v1209
      %1212 = vst [vmem:[%s868 + $0x170] sm:$0xff] %v932
      %1213 = vst [vmem:[%s868 + $0x178] sm:$0xff] %v1210
      %1214 = vrot.lane.b32.xlu0 %v806, 75
      %v1215 = vpop.permute.xlu0 %1214
      %1216 = vrot.lane.b32.xlu0 %v813, 75
      %v1217 = vpop.permute.xlu0 %1216
      %1218 = vrot.lane.b32.xlu0 %v816, 75
      %v1219 = vpop.permute.xlu0 %1218
      %vm1220 = vcmask 613376
      %v1221 = vsel %vm1220, %v1215, %v1217
      %v1222 = vsel %vm1220, %v1217, %v1219
      %v1225 = vsel %vm887, %v1221, 0.0
      %v1226 = vsel %vm888, %v1222, 0.0
      %1227 = vst [vmem:[%s868 + $0x180] sm:$0xff] %v1225
      %1228 = vst [vmem:[%s868 + $0x188] sm:$0xff] %v1226
      %v1229 = vld [vmem:[%s1] sm:$0xff]
      %v1230 = vld [vmem:[%s1 + $0x8] sm:$0xff]
      %v1231 = vld [vmem:[%s868] sm:$0xff]
      %v1232 = vld [vmem:[%s868 + $0x8] sm:$0xff]
      %v1233 = vld [vmem:[%s868 + $0x10] sm:$0xff]
      %v1234 = vld [vmem:[%s868 + $0x18] sm:$0xff]
      %v1235 = vld [vmem:[%s868 + $0x20] sm:$0xff]
      %v1236 = vld [vmem:[%s868 + $0x28] sm:$0xff]
      %v1237 = vld [vmem:[%s868 + $0x30] sm:$0xff]
      %v1238 = vld [vmem:[%s868 + $0x38] sm:$0xff]
      %v1239 = vld [vmem:[%s868 + $0x40] sm:$0xff]
      %v1240 = vld [vmem:[%s868 + $0x48] sm:$0xff]
      %v1241 = vld [vmem:[%s868 + $0x50] sm:$0xff]
      %v1242 = vld [vmem:[%s868 + $0x58] sm:$0xff]
      %v1243 = vld [vmem:[%s868 + $0x60] sm:$0xff]
      %v1244 = vld [vmem:[%s868 + $0x68] sm:$0xff]
      %v1245 = vld [vmem:[%s868 + $0x70] sm:$0xff]
      %v1246 = vld [vmem:[%s868 + $0x78] sm:$0xff]
      %v1247 = vld [vmem:[%s868 + $0x80] sm:$0xff]
      %v1248 = vld [vmem:[%s868 + $0x88] sm:$0xff]
      %v1249 = vld [vmem:[%s868 + $0x90] sm:$0xff]
      %v1250 = vld [vmem:[%s868 + $0x98] sm:$0xff]
      %v1251 = vld [vmem:[%s868 + $0xa0] sm:$0xff]
      %v1252 = vld [vmem:[%s868 + $0xa8] sm:$0xff]
      %v1253 = vld [vmem:[%s868 + $0xb0] sm:$0xff]
      %v1254 = vld [vmem:[%s868 + $0xb8] sm:$0xff]
      %v1255 = vld [vmem:[%s868 + $0xc0] sm:$0xff]
      %v1256 = vld [vmem:[%s868 + $0xc8] sm:$0xff]
      %v1257 = vld [vmem:[%s868 + $0xd0] sm:$0xff]
      %v1258 = vld [vmem:[%s868 + $0xd8] sm:$0xff]
      %v1259 = vld [vmem:[%s868 + $0xe0] sm:$0xff]
      %v1260 = vld [vmem:[%s868 + $0xe8] sm:$0xff]
      %v1261 = vld [vmem:[%s868 + $0xf0] sm:$0xff]
      %v1262 = vld [vmem:[%s868 + $0xf8] sm:$0xff]
      %v1263 = vld [vmem:[%s868 + $0x100] sm:$0xff]
      %v1264 = vld [vmem:[%s868 + $0x108] sm:$0xff]
      %v1265 = vld [vmem:[%s868 + $0x110] sm:$0xff]
      %v1266 = vld [vmem:[%s868 + $0x118] sm:$0xff]
      %v1267 = vld [vmem:[%s868 + $0x120] sm:$0xff]
      %v1268 = vld [vmem:[%s868 + $0x128] sm:$0xff]
      %v1269 = vld [vmem:[%s868 + $0x130] sm:$0xff]
      %v1270 = vld [vmem:[%s868 + $0x138] sm:$0xff]
      %v1271 = vld [vmem:[%s868 + $0x140] sm:$0xff]
      %v1272 = vld [vmem:[%s868 + $0x148] sm:$0xff]
      %v1273 = vld [vmem:[%s868 + $0x150] sm:$0xff]
      %v1274 = vld [vmem:[%s868 + $0x158] sm:$0xff]
      %v1275 = vld [vmem:[%s868 + $0x160] sm:$0xff]
      %v1276 = vld [vmem:[%s868 + $0x168] sm:$0xff]
      %v1277 = vld [vmem:[%s868 + $0x170] sm:$0xff]
      %v1278 = vld [vmem:[%s868 + $0x178] sm:$0xff]
      %v1279 = vld [vmem:[%s868 + $0x180] sm:$0xff]
      %v1280 = vld [vmem:[%s868 + $0x188] sm:$0xff]
      %vm1281 = vcmask 588800
      %v1283 = vsel %vm1281, %v1230, 0
      %1285 = vmatprep.subr.mxu0 %v1232
      %1286 = vmatpush1.msra.mxu0 %v1231
      %1287 = vmatprep.subr.mxu0 %v1234
      %1288 = vmatpush1.msra.mxu0 %v1233
      %1289 = vmatprep.subr.mxu0 %v1236
      %1290 = vmatpush1.msra.mxu0 %v1235
      %1291 = vmatprep.subr.mxu0 %v1238
      %1292 = vmatpush1.msra.mxu0 %v1237
      %1293 = vmatprep.subr.mxu0 %v1240
      %1294 = vmatpush1.msra.mxu0 %v1239
      %1295 = vmatprep.subr.mxu0 %v1242
      %1296 = vmatpush1.msra.mxu0 %v1241
      %1297 = vmatprep.subr.mxu0 %v1244
      %1298 = vmatpush1.msra.mxu0 %v1243
      %1299 = vmatprep.subr.mxu0 %v1246
      %1300 = vmatpush1.msra.mxu0 %v1245
      %1301 = vmatprep.subr.mxu0 %v1248
      %1302 = vmatpush1.msra.mxu0 %v1247
      %1303 = vmatprep.subr.mxu0 %v1250
      %1304 = vmatpush1.msra.mxu0 %v1249
      %1305 = vmatprep.subr.mxu0 %v1252
      %1306 = vmatpush1.msra.mxu0 %v1251
      %1307 = vmatprep.subr.mxu0 %v1254
      %1308 = vmatpush1.msra.mxu0 %v1253
      %1309 = vmatprep.subr.mxu0 %v1256
      %1310 = vmatpush1.msra.mxu0 %v1255
      %1311 = vmatprep.subr.mxu0 %v1258
      %1312 = vmatpush1.msra.mxu0 %v1257
      %1313 = vmatprep.subr.mxu0 %v1260
      %1314 = vmatpush1.msra.mxu0 %v1259
      %1315 = vmatprep.subr.mxu0 %v1262
      %1316 = vmatpush1.msra.mxu0 %v1261
      %1317 = vmatprep.subr.mxu0 %v1264
      %1318 = vmatpush1.msra.mxu0 %v1263
      %1319 = vmatprep.subr.mxu0 %v1266
      %1320 = vmatpush1.msra.mxu0 %v1265
      %1321 = vmatprep.subr.mxu0 %v1268
      %1322 = vmatpush1.msra.mxu0 %v1267
      %1323 = vmatprep.subr.mxu0 %v1270
      %1324 = vmatpush1.msra.mxu0 %v1269
      %1325 = vmatprep.subr.mxu0 %v1272
      %1326 = vmatpush1.msra.mxu0 %v1271
      %1327 = vmatprep.subr.mxu0 %v1274
      %1328 = vmatpush1.msra.mxu0 %v1273
      %1329 = vmatprep.subr.mxu0 %v1276
      %1330 = vmatpush1.msra.mxu0 %v1275
      %1331 = vmatprep.subr.mxu0 %v1278
      %1332 = vmatpush1.msra.mxu0 %v1277
      %1333 = vmatprep.subr.mxu0 %v1280
      %1334 = vmatpush1.msra.mxu0 %v1279
      %1335 = vmatprep.subr.mxu0 0.0
      %1336 = vmatpush1.msra.mxu0 0.0
      %1337 = vmatprep.subr.mxu0 0.0
      %1338 = vmatpush1.msra.mxu0 0.0
      %1339 = vmatprep.subr.mxu0 0.0
      %1340 = vmatpush1.msra.mxu0 0.0
      %1341 = vmatprep.subr.mxu0 0.0
      %1342 = vmatpush1.msra.mxu0 0.0
      %1343 = vmatprep.subr.mxu0 0.0
      %1344 = vmatpush1.msra.mxu0 0.0
      %1345 = vmatprep.subr.mxu0 0.0
      %1346 = vmatpush1.msra.mxu0 0.0
      %1347 = vmatprep.subr.mxu0 0.0
      %1348 = vmatpush1.msra.mxu0 0.0
      %1349 = vmatprep.mubr.f32.mxu0 %v1283
      %1350 = vmatmul.mubr.f32.gmra.mrb[0].mxu0 %v1229
      %v1351 = vpop.f32.mrb[0].mxu0
      %v1352 = vadd.f32 0.0, %v1351
      %v1353 = vpop.f32.mrb[0].mxu0
      %v1354 = vadd.f32 0.0, %v1353
      %1355 = vdwg.mxu0
      %1356 = vst [vmem:[%s165] sm:$0xff] %v1352
      %1357 = vst [vmem:[%s165 + $0x8] sm:$0xff] %v1354
      %s1358 = smul.u32 2, %s18
      %p1359 = scmp.lt.s32.totalorder %s17, 1
      %s1360 = scalar_select %p1359, %s17, 1
      %p1361 = scmp.lt.s32.totalorder %s1358, 1
      %s1362 = scalar_select %p1361, %s1358, 1
      %s1363 = smul.addr %s1360, 2
      %s1364 = sadd.s32 %s1362, %s1363
      %s1365 = smul.addr %s1364, 8
      %s1366 = scalar_lea.vmem %s2, %s1365
      // Predicated region
      $region29: #{multi_scale_conv.1} parent=27 // pred_check
        %p1367 = pneg %p92
      $region30: #{multi_scale_conv.1} parent=27 // pred_check_branch
        %1369 = sbr.rel (%p1367) target = $region32
      $region31: #{multi_scale_conv.1} parent=27 // pred_region
        %s1370 = smul.u32 2, %s18
      $region32: #{multi_scale_conv.1} parent=27 // pred_fallthru
        _
    $region28: #{multi_scale_conv.1} parent=5 // pred_fallthru
      _
    %p1371 = scmp.le.s32.totalorder 2, %s8
    // Predicated region
    $region33: #{multi_scale_conv.1} parent=5 // pred_check
      %p1372 = pneg %p1371
    $region34: #{multi_scale_conv.1} parent=5 // pred_check_branch
      %1374 = sbr.rel (%p1372) target = $region36
    $region35: #{multi_scale_conv.1} parent=5 // pred_region
      %s1375 = ssub.s32 %s8, 2
      // Predicated region
      $region37: #{multi_scale_conv.1} parent=35 // pred_check
        %p1376 = pneg %p98
      $region38: #{multi_scale_conv.1} parent=35 // pred_check_branch
        %1378 = sbr.rel (%p1376) target = $region40
      $region39: #{multi_scale_conv.1} parent=35 // pred_region
        %s1379 = smul.u32 2, %s20
        %p1380 = scmp.lt.s32.totalorder %s19, 1
        %s1381 = scalar_select %p1380, %s19, 1
        %p1382 = scmp.lt.s32.totalorder %s1379, 1
        %s1383 = scalar_select %p1382, %s1379, 1
        %s1384 = smul.addr %s1381, 2
        %s1385 = sadd.s32 %s1383, %s1384
        %s1386 = smul.addr %s1385, 8
        %s1387 = scalar_lea.vmem %s2, %s1386
      $region40: #{multi_scale_conv.1} parent=35 // pred_fallthru
        _
    $region36: #{multi_scale_conv.1} parent=5 // pred_fallthru
      _
  $region6: #{multi_scale_conv.1} parent=0 // loop_footer
    %s12 = sadd.s32 1, %s8
  $region7: #{multi_scale_conv.1} parent=0 // loop_footer_branch
    %7 = sbr.rel target = $region3
  $region8: #{multi_scale_conv.1} parent=0 // loop_exit
    _

</llo_original>
